<compile_context>
chip_gen: v5e
topology: v5e:2x2
jax: 0.10.0
libtpu: 0.0.40
codegen_flags: <defaults>
</compile_context>

<pallas_src>
import math

import jax
import jax.numpy as jnp
from jax import lax
from jax.experimental import pallas as pl
from jax.experimental.pallas import tpu as pltpu

# Small synthetic config (module defaults are vocab=40478, d_model=768, 12 layers).
VOCAB = 128          # multiple of 128 (real V would be padded / vocab-tiled)
MAX_SEQ = 16
N_LAYERS = 2
D_MODEL = 128        # lane-dense last dim (padded up from a "toy" 32)
N_HEADS = 4
D_HEAD = D_MODEL // N_HEADS
D_FF = 4 * D_MODEL
LN_EPS = 1e-5        # PyTorch nn.LayerNorm default eps

# Packed per-layer vector rows (in a (N_LAYERS, VEC_ROWS, D_FF) f32 array;
# D_MODEL-sized vectors live in lanes [0:D_MODEL] of their row).
(R_BQ, R_BK, R_BV, R_BO, R_BF2, R_G1, R_BE1, R_G2, R_BE2, R_BF1) = range(10)
VEC_ROWS = 16        # padded to a multiple of 8 sublanes


# ----------------------------- in-kernel helpers -----------------------------

def _layernorm(x, gamma, beta):
    mu = jnp.mean(x, axis=-1, keepdims=True)
    var = jnp.mean((x - mu) ** 2, axis=-1, keepdims=True)
    return (x - mu) * lax.rsqrt(var + LN_EPS) * gamma + beta


def _gelu_approx(x):
    # tanh ("approximate") GELU, matching act='approximate_gelu'
    c = math.sqrt(2.0 / math.pi)
    return 0.5 * x * (1.0 + jnp.tanh(c * (x + 0.044715 * x * x * x)))


# ------------------------------- Pallas kernels ------------------------------

def decoder_stack_kernel(x_in_ref, wqkv_ref, wo_ref, w1_ref, w2_ref, vec_ref,
                         x_out_ref, attn_scr):
    """One grid step = one (batch block, layer). Activation stays resident in
    the output VMEM block across the layer axis."""
    layer = pl.program_id(1)

    @pl.when(layer == 0)
    def _():
        # Initialize the resident activation from the kernel input.
        x_out_ref[...] = x_in_ref[...]

    x = x_out_ref[0]                       # (S, D) f32, resident across layers
    S = x.shape[0]
    vec = vec_ref[0]                       # (VEC_ROWS, D_FF) f32

    bq = vec[R_BQ:R_BQ + 1, :D_MODEL]
    bk = vec[R_BK:R_BK + 1, :D_MODEL]
    bv = vec[R_BV:R_BV + 1, :D_MODEL]
    bo = vec[R_BO:R_BO + 1, :D_MODEL]
    bf2 = vec[R_BF2:R_BF2 + 1, :D_MODEL]
    g1 = vec[R_G1:R_G1 + 1, :D_MODEL]
    be1 = vec[R_BE1:R_BE1 + 1, :D_MODEL]
    g2 = vec[R_G2:R_G2 + 1, :D_MODEL]
    be2 = vec[R_BE2:R_BE2 + 1, :D_MODEL]
    bf1 = vec[R_BF1:R_BF1 + 1, :]          # (1, D_FF)

    xb = x.astype(jnp.bfloat16)

    # Fused QKV projection: one full-K MXU matmul instead of three.
    qkv = jnp.dot(xb, wqkv_ref[0], preferred_element_type=jnp.float32)  # (S, 3D)
    q = qkv[:, 0:D_MODEL] + bq
    k = qkv[:, D_MODEL:2 * D_MODEL] + bk
    v = qkv[:, 2 * D_MODEL:3 * D_MODEL] + bv

    # Causal mask / scale computed once per layer (hoisted out of head loop).
    rows = lax.broadcasted_iota(jnp.int32, (S, S), 0)
    cols = lax.broadcasted_iota(jnp.int32, (S, S), 1)
    causal = cols <= rows
    scale = jnp.float32(1.0 / math.sqrt(D_HEAD))

    qb = q.astype(jnp.bfloat16)
    kb = k.astype(jnp.bfloat16)
    vb = v.astype(jnp.bfloat16)

    # Per-head attention: no k.T transpose (contract last dims of both), no
    # concat (heads written straight into lane slices of a VMEM scratch).
    nt_dims = (((1,), (1,)), ((), ()))     # contract last dim of both operands
    for h in range(N_HEADS):               # static unrolled (N_HEADS is small)
        lo = h * D_HEAD
        qh = qb[:, lo:lo + D_HEAD]
        kh = kb[:, lo:lo + D_HEAD]
        vh = vb[:, lo:lo + D_HEAD]
        s = lax.dot_general(qh, kh, nt_dims,
                            preferred_element_type=jnp.float32) * scale
        s = jnp.where(causal, s, jnp.float32(-1e30))
        s = s - jnp.max(s, axis=-1, keepdims=True)
        p = jnp.exp(s)
        denom = jnp.sum(p, axis=-1, keepdims=True)
        p = p * pl.reciprocal(denom, approx=True)       # EUP, ~free
        oh = jnp.dot(p.astype(jnp.bfloat16), vh,
                     preferred_element_type=jnp.float32)
        attn_scr[:, lo:lo + D_HEAD] = oh

    attn = attn_scr[...].astype(jnp.bfloat16)            # (S, D)
    sa = jnp.dot(attn, wo_ref[0], preferred_element_type=jnp.float32) + bo
    x1 = _layernorm(x + sa, g1, be1)                      # post-norm (pre_norm=False)

    h1 = jnp.dot(x1.astype(jnp.bfloat16), w1_ref[0],
                 preferred_element_type=jnp.float32) + bf1
    h1 = _gelu_approx(h1)
    mlp = jnp.dot(h1.astype(jnp.bfloat16), w2_ref[0],
                  preferred_element_type=jnp.float32) + bf2
    x2 = _layernorm(x1 + mlp, g2, be2)                    # post-norm

    x_out_ref[0] = x2


def logits_kernel(x_ref, emb_ref, out_ref):
    # x block: (1, S, D) f32; emb block: (TILE_V, D) bf16; out: (1, S, TILE_V).
    # Contract over D (== x @ E.T) without ever materializing E.T; the output
    # tile is lane-dense over the vocab dimension.
    xb = x_ref[0].astype(jnp.bfloat16)
    out_ref[0] = lax.dot_general(xb, emb_ref[...],
                                 dimension_numbers=(((1,), (1,)), ((), ())),
                                 preferred_element_type=jnp.float32)


# --------------------------------- wrappers ----------------------------------

_VMEM_LIMIT = 32 * 1024 * 1024   # safe on v5e/v6e/v7x; re-derive for real sizes


def decoder_stack(x, params):
    B, S, D = x.shape
    L = params["wqkv"].shape[0]
    return pl.pallas_call(
        decoder_stack_kernel,
        out_shape=jax.ShapeDtypeStruct((B, S, D), jnp.float32),
        grid=(B, L),
        in_specs=[
            pl.BlockSpec((1, S, D), lambda b, l: (b, 0, 0)),
            pl.BlockSpec((1, D, 3 * D), lambda b, l: (l, 0, 0)),
            pl.BlockSpec((1, D, D), lambda b, l: (l, 0, 0)),
            pl.BlockSpec((1, D, D_FF), lambda b, l: (l, 0, 0)),
            pl.BlockSpec((1, D_FF, D), lambda b, l: (l, 0, 0)),
            pl.BlockSpec((1, VEC_ROWS, D_FF), lambda b, l: (l, 0, 0)),
        ],
        # Output block index constant over the layer axis -> activation stays
        # resident in VMEM across layers; written back to HBM once per batch.
        out_specs=pl.BlockSpec((1, S, D), lambda b, l: (b, 0, 0)),
        scratch_shapes=[pltpu.VMEM((S, D), jnp.float32)],
        compiler_params=pltpu.CompilerParams(
            dimension_semantics=("parallel", "arbitrary"),  # batch || TCs, layers sequential
            vmem_limit_bytes=_VMEM_LIMIT),
    )(x, params["wqkv"], params["wo"], params["w1"], params["w2"], params["vec"])


def compute_logits(x, emb_bf16, tile_v=2048):
    B, S, D = x.shape
    V = emb_bf16.shape[0]
    tile_v = min(tile_v, V)
    assert V % tile_v == 0 and tile_v % 128 == 0
    return pl.pallas_call(
        logits_kernel,
        out_shape=jax.ShapeDtypeStruct((B, S, V), jnp.float32),
        grid=(B, V // tile_v),
        in_specs=[pl.BlockSpec((1, S, D), lambda b, j: (b, 0, 0)),
                  pl.BlockSpec((tile_v, D), lambda b, j: (j, 0))],
        out_specs=pl.BlockSpec((1, S, tile_v), lambda b, j: (b, 0, j)),
        compiler_params=pltpu.CompilerParams(
            dimension_semantics=("parallel", "arbitrary"),
            vmem_limit_bytes=_VMEM_LIMIT),
    )(x, emb_bf16)


# ------------------------------ parameter setup -------------------------------

def init_params(key):
    ks = jax.random.split(key, 8)
    token_emb = 0.02 * jax.random.normal(ks[0], (VOCAB, D_MODEL), jnp.float32)
    # nn.Parameter(torch.zeros(...)); small noise keeps the add nontrivial.
    pos_emb = 0.01 * jax.random.normal(ks[1], (MAX_SEQ, D_MODEL), jnp.float32)

    wqkv = 0.02 * jax.random.normal(ks[2], (N_LAYERS, D_MODEL, 3 * D_MODEL), jnp.float32)
    wo = 0.02 * jax.random.normal(ks[3], (N_LAYERS, D_MODEL, D_MODEL), jnp.float32)
    w1 = 0.02 * jax.random.normal(ks[4], (N_LAYERS, D_MODEL, D_FF), jnp.float32)
    w2 = 0.02 * jax.random.normal(ks[5], (N_LAYERS, D_FF, D_MODEL), jnp.float32)

    # Packed per-layer vectors: biases + LayerNorm affine params in one array.
    vec = jnp.zeros((N_LAYERS, VEC_ROWS, D_FF), jnp.float32)
    vec = vec.at[:, R_BQ, :D_MODEL].set(
        0.01 * jax.random.normal(ks[6], (N_LAYERS, D_MODEL), jnp.float32))
    vec = vec.at[:, R_BF1, :].set(
        0.01 * jax.random.normal(ks[7], (N_LAYERS, D_FF), jnp.float32))
    vec = vec.at[:, R_G1, :D_MODEL].set(1.0)   # sa_norm.weight
    vec = vec.at[:, R_G2, :D_MODEL].set(1.0)   # mlp_norm.weight
    # bk, bv, bo, bf2, be1, be2 remain zero (matching zero-init defaults).

    params = dict(
        wqkv=wqkv.astype(jnp.bfloat16),
        wo=wo.astype(jnp.bfloat16),
        w1=w1.astype(jnp.bfloat16),
        w2=w2.astype(jnp.bfloat16),
        vec=vec,                       # biases / LN params stay f32
    )
    return token_emb, pos_emb, params


# --------------------------------- forward ------------------------------------

def gpt_forward(ids, token_emb, pos_emb, params, emb_bf16):
    B, S = ids.shape
    # TODO(synk): token-embedding gather stays in plain JAX (data-dependent HBM
    # gather); XLA fuses the positional add into it, so no extra Pallas kernel.
    x = jnp.take(token_emb, ids, axis=0) + pos_emb[None, :S, :]   # (B, S, D) f32
    x = decoder_stack(x, params)                                  # fused Pallas block
    logits = compute_logits(x, emb_bf16)                          # vocab-tiled x @ E.T
    return logits


if __name__ == "__main__":
    key = jax.random.PRNGKey(0)
    pkey, ikey = jax.random.split(key)
    token_emb, pos_emb, params = init_params(pkey)
    emb_bf16 = token_emb.astype(jnp.bfloat16)   # bf16 copy for the logits matmul

    B, S = 2, 8
    ids = jax.random.randint(ikey, (B, S), 0, VOCAB, dtype=jnp.int32)

    fwd = jax.jit(gpt_forward)
    logits = fwd(ids, token_emb, pos_emb, params, emb_bf16)
    logits = jax.block_until_ready(logits)

    assert logits.shape == (B, S, VOCAB), logits.shape
    assert logits.dtype == jnp.float32
    assert bool(jnp.isfinite(logits).all())
    print("KERNEL_OK")
</pallas_src>

<mosaic_0001>
module attributes {stable_mosaic.version = 11 : i64} {
  func.func @decoder_stack_kernel(%arg0: i32, %arg1: i32, %arg2: memref<1x8x128xf32, #tpu.memory_space<vmem>>, %arg3: memref<1x128x384xbf16, #tpu.memory_space<vmem>>, %arg4: memref<1x128x128xbf16, #tpu.memory_space<vmem>>, %arg5: memref<1x128x512xbf16, #tpu.memory_space<vmem>>, %arg6: memref<1x512x128xbf16, #tpu.memory_space<vmem>>, %arg7: memref<1x16x512xf32, #tpu.memory_space<vmem>>, %arg8: memref<1x8x128xf32, #tpu.memory_space<vmem>>, %arg9: memref<8x128xf32, #tpu.memory_space<vmem>>) attributes {dimension_semantics = [#tpu.dimension_semantics<parallel>, #tpu.dimension_semantics<arbitrary>], iteration_bounds = array<i64: 2, 2>, scalar_prefetch = 0 : i64, scratch_operands = 1 : i64, tpu.core_type = #tpu.core_type<tc>, window_params = [{transform_indices = @transform_0, window_bounds = array<i64: 1, 8, 128>}, {transform_indices = @transform_1, window_bounds = array<i64: 1, 128, 384>}, {transform_indices = @transform_2, window_bounds = array<i64: 1, 128, 128>}, {transform_indices = @transform_3, window_bounds = array<i64: 1, 128, 512>}, {transform_indices = @transform_4, window_bounds = array<i64: 1, 512, 128>}, {transform_indices = @transform_5, window_bounds = array<i64: 1, 16, 512>}, {transform_indices = @transform_6, window_bounds = array<i64: 1, 8, 128>}]} {
    %c0_i32 = arith.constant 0 : i32
    %0 = arith.cmpi eq, %arg1, %c0_i32 : i32
    %1 = arith.extui %0 : i1 to i32
    %c0_i32_0 = arith.constant 0 : i32
    %2 = arith.cmpi ne, %1, %c0_i32_0 : i32
    scf.if %2 {
      %c0_69 = arith.constant 0 : index
      %c0_70 = arith.constant 0 : index
      %c0_71 = arith.constant 0 : index
      %201 = vector.load %arg2[%c0_69, %c0_70, %c0_71] : memref<1x8x128xf32, #tpu.memory_space<vmem>>, vector<1x8x128xf32>
      %c0_72 = arith.constant 0 : index
      %c0_73 = arith.constant 0 : index
      %c0_74 = arith.constant 0 : index
      %202 = vector.load %arg8[%c0_72, %c0_73, %c0_74] : memref<1x8x128xf32, #tpu.memory_space<vmem>>, vector<1x8x128xf32>
      tpu.vector_store %arg8[%c0_72, %c0_73, %c0_74], %201 {strides = array<i32>} : memref<1x8x128xf32, #tpu.memory_space<vmem>>, vector<1x8x128xf32>,
    } else {
    }
    %c0 = arith.constant 0 : index
    %c0_1 = arith.constant 0 : index
    %c0_2 = arith.constant 0 : index
    %3 = vector.load %arg8[%c0, %c0_1, %c0_2] : memref<1x8x128xf32, #tpu.memory_space<vmem>>, vector<1x8x128xf32>
    %4 = vector.shape_cast %3 : vector<1x8x128xf32> to vector<8x128xf32>
    %c0_3 = arith.constant 0 : index
    %c0_4 = arith.constant 0 : index
    %c0_5 = arith.constant 0 : index
    %5 = vector.load %arg7[%c0_3, %c0_4, %c0_5] : memref<1x16x512xf32, #tpu.memory_space<vmem>>, vector<1x16x512xf32>
    %6 = vector.shape_cast %5 : vector<1x16x512xf32> to vector<16x512xf32>
    %7 = vector.extract_strided_slice %6 {offsets = [0, 0], sizes = [1, 128], strides = [1, 1]} : vector<16x512xf32> to vector<1x128xf32>
    %8 = vector.extract_strided_slice %6 {offsets = [1, 0], sizes = [1, 128], strides = [1, 1]} : vector<16x512xf32> to vector<1x128xf32>
    %9 = vector.extract_strided_slice %6 {offsets = [2, 0], sizes = [1, 128], strides = [1, 1]} : vector<16x512xf32> to vector<1x128xf32>
    %10 = vector.extract_strided_slice %6 {offsets = [3, 0], sizes = [1, 128], strides = [1, 1]} : vector<16x512xf32> to vector<1x128xf32>
    %11 = vector.extract_strided_slice %6 {offsets = [4, 0], sizes = [1, 128], strides = [1, 1]} : vector<16x512xf32> to vector<1x128xf32>
    %12 = vector.extract_strided_slice %6 {offsets = [5, 0], sizes = [1, 128], strides = [1, 1]} : vector<16x512xf32> to vector<1x128xf32>
    %13 = vector.extract_strided_slice %6 {offsets = [6, 0], sizes = [1, 128], strides = [1, 1]} : vector<16x512xf32> to vector<1x128xf32>
    %14 = vector.extract_strided_slice %6 {offsets = [7, 0], sizes = [1, 128], strides = [1, 1]} : vector<16x512xf32> to vector<1x128xf32>
    %15 = vector.extract_strided_slice %6 {offsets = [8, 0], sizes = [1, 128], strides = [1, 1]} : vector<16x512xf32> to vector<1x128xf32>
    %16 = vector.extract_strided_slice %6 {offsets = [9, 0], sizes = [1, 512], strides = [1, 1]} : vector<16x512xf32> to vector<1x512xf32>
    %17 = arith.truncf %4 : vector<8x128xf32> to vector<8x128xbf16>
    %c0_6 = arith.constant 0 : index
    %c0_7 = arith.constant 0 : index
    %c0_8 = arith.constant 0 : index
    %18 = vector.load %arg3[%c0_6, %c0_7, %c0_8] : memref<1x128x384xbf16, #tpu.memory_space<vmem>>, vector<1x128x384xbf16>
    %19 = vector.shape_cast %18 : vector<1x128x384xbf16> to vector<128x384xbf16>
    %cst = arith.constant dense<0.000000e+00> : vector<8x384xf32>
    %20 = tpu.matmul %17, %19, %cst {dimension_numbers = #tpu.dot_dimension_numbers<[1], [0], [0], [1], [0, 0, 1, 1], [], []>} : vector<8x128xbf16>, vector<128x384xbf16>, vector<8x384xf32> -> vector<8x384xf32>
    %21 = vector.extract_strided_slice %20 {offsets = [0, 0], sizes = [8, 128], strides = [1, 1]} : vector<8x384xf32> to vector<8x128xf32>
    %22 = vector.broadcast %7 : vector<1x128xf32> to vector<8x128xf32>
    %23 = arith.addf %21, %22 : vector<8x128xf32>
    %24 = vector.extract_strided_slice %20 {offsets = [0, 128], sizes = [8, 128], strides = [1, 1]} : vector<8x384xf32> to vector<8x128xf32>
    %25 = vector.broadcast %8 : vector<1x128xf32> to vector<8x128xf32>
    %26 = arith.addf %24, %25 : vector<8x128xf32>
    %27 = vector.extract_strided_slice %20 {offsets = [0, 256], sizes = [8, 128], strides = [1, 1]} : vector<8x384xf32> to vector<8x128xf32>
    %28 = vector.broadcast %9 : vector<1x128xf32> to vector<8x128xf32>
    %29 = arith.addf %27, %28 : vector<8x128xf32>
    %30 = tpu.iota {dimensions = array<i32: 0>} : vector<8x8xi32>
    %31 = tpu.iota {dimensions = array<i32: 1>} : vector<8x8xi32>
    %32 = arith.cmpi sle, %31, %30 : vector<8x8xi32>
    %33 = arith.truncf %23 : vector<8x128xf32> to vector<8x128xbf16>
    %34 = arith.truncf %26 : vector<8x128xf32> to vector<8x128xbf16>
    %35 = arith.truncf %29 : vector<8x128xf32> to vector<8x128xbf16>
    %36 = vector.extract_strided_slice %33 {offsets = [0, 0], sizes = [8, 32], strides = [1, 1]} : vector<8x128xbf16> to vector<8x32xbf16>
    %37 = vector.extract_strided_slice %34 {offsets = [0, 0], sizes = [8, 32], strides = [1, 1]} : vector<8x128xbf16> to vector<8x32xbf16>
    %38 = vector.extract_strided_slice %35 {offsets = [0, 0], sizes = [8, 32], strides = [1, 1]} : vector<8x128xbf16> to vector<8x32xbf16>
    %cst_9 = arith.constant dense<0.000000e+00> : vector<8x8xf32>
    %39 = tpu.matmul %36, %37, %cst_9 {dimension_numbers = #tpu.dot_dimension_numbers<[1], [1], [0], [0], [0, 0, 1, 0], [], []>} : vector<8x32xbf16>, vector<8x32xbf16>, vector<8x8xf32> -> vector<8x8xf32>
    %cst_10 = arith.constant 0.176776692 : f32
    %40 = vector.broadcast %cst_10 : f32 to vector<8x8xf32>
    %41 = arith.mulf %39, %40 : vector<8x8xf32>
    %cst_11 = arith.constant -1.000000e+30 : f32
    %42 = vector.broadcast %cst_11 : f32 to vector<8x8xf32>
    %43 = arith.select %32, %41, %42 : vector<8x8xi1>, vector<8x8xf32>
    %cst_12 = arith.constant dense<0xFF800000> : vector<8xf32>
    %44 = vector.multi_reduction <maximumf>, %43, %cst_12 [1] : vector<8x8xf32> to vector<8xf32>
    %45 = vector.shape_cast %44 : vector<8xf32> to vector<8x1xf32>
    %46 = vector.broadcast %45 : vector<8x1xf32> to vector<8x8xf32>
    %47 = arith.subf %43, %46 : vector<8x8xf32>
    %48 = math.exp %47 : vector<8x8xf32>
    %cst_13 = arith.constant dense<0.000000e+00> : vector<8xf32>
    %49 = vector.multi_reduction <add>, %48, %cst_13 [1] : vector<8x8xf32> to vector<8xf32>
    %50 = vector.shape_cast %49 : vector<8xf32> to vector<8x1xf32>
    %51 = tpu.reciprocal %50 {approx = true} : vector<8x1xf32> -> vector<8x1xf32>
    %52 = vector.broadcast %51 : vector<8x1xf32> to vector<8x8xf32>
    %53 = arith.mulf %48, %52 : vector<8x8xf32>
    %54 = arith.truncf %53 : vector<8x8xf32> to vector<8x8xbf16>
    %cst_14 = arith.constant dense<0.000000e+00> : vector<8x32xf32>
    %55 = tpu.matmul %54, %38, %cst_14 {dimension_numbers = #tpu.dot_dimension_numbers<[1], [0], [0], [1], [0, 0, 1, 1], [], []>} : vector<8x8xbf16>, vector<8x32xbf16>, vector<8x32xf32> -> vector<8x32xf32>
    %c0_15 = arith.constant 0 : index
    %c0_16 = arith.constant 0 : index
    %56 = vector.load %arg9[%c0_15, %c0_16] : memref<8x128xf32, #tpu.memory_space<vmem>>, vector<8x32xf32>
    tpu.vector_store %arg9[%c0_15, %c0_16], %55 {strides = array<i32>} : memref<8x128xf32, #tpu.memory_space<vmem>>, vector<8x32xf32>,
    %57 = vector.extract_strided_slice %33 {offsets = [0, 32], sizes = [8, 32], strides = [1, 1]} : vector<8x128xbf16> to vector<8x32xbf16>
    %58 = vector.extract_strided_slice %34 {offsets = [0, 32], sizes = [8, 32], strides = [1, 1]} : vector<8x128xbf16> to vector<8x32xbf16>
    %59 = vector.extract_strided_slice %35 {offsets = [0, 32], sizes = [8, 32], strides = [1, 1]} : vector<8x128xbf16> to vector<8x32xbf16>
    %cst_17 = arith.constant dense<0.000000e+00> : vector<8x8xf32>
    %60 = tpu.matmul %57, %58, %cst_17 {dimension_numbers = #tpu.dot_dimension_numbers<[1], [1], [0], [0], [0, 0, 1, 0], [], []>} : vector<8x32xbf16>, vector<8x32xbf16>, vector<8x8xf32> -> vector<8x8xf32>
    %cst_18 = arith.constant 0.176776692 : f32
    %61 = vector.broadcast %cst_18 : f32 to vector<8x8xf32>
    %62 = arith.mulf %60, %61 : vector<8x8xf32>
    %cst_19 = arith.constant -1.000000e+30 : f32
    %63 = vector.broadcast %cst_19 : f32 to vector<8x8xf32>
    %64 = arith.select %32, %62, %63 : vector<8x8xi1>, vector<8x8xf32>
    %cst_20 = arith.constant dense<0xFF800000> : vector<8xf32>
    %65 = vector.multi_reduction <maximumf>, %64, %cst_20 [1] : vector<8x8xf32> to vector<8xf32>
    %66 = vector.shape_cast %65 : vector<8xf32> to vector<8x1xf32>
    %67 = vector.broadcast %66 : vector<8x1xf32> to vector<8x8xf32>
    %68 = arith.subf %64, %67 : vector<8x8xf32>
    %69 = math.exp %68 : vector<8x8xf32>
    %cst_21 = arith.constant dense<0.000000e+00> : vector<8xf32>
    %70 = vector.multi_reduction <add>, %69, %cst_21 [1] : vector<8x8xf32> to vector<8xf32>
    %71 = vector.shape_cast %70 : vector<8xf32> to vector<8x1xf32>
    %72 = tpu.reciprocal %71 {approx = true} : vector<8x1xf32> -> vector<8x1xf32>
    %73 = vector.broadcast %72 : vector<8x1xf32> to vector<8x8xf32>
    %74 = arith.mulf %69, %73 : vector<8x8xf32>
    %75 = arith.truncf %74 : vector<8x8xf32> to vector<8x8xbf16>
    %cst_22 = arith.constant dense<0.000000e+00> : vector<8x32xf32>
    %76 = tpu.matmul %75, %59, %cst_22 {dimension_numbers = #tpu.dot_dimension_numbers<[1], [0], [0], [1], [0, 0, 1, 1], [], []>} : vector<8x8xbf16>, vector<8x32xbf16>, vector<8x32xf32> -> vector<8x32xf32>
    %c0_23 = arith.constant 0 : index
    %c32 = arith.constant 32 : index
    %77 = vector.load %arg9[%c0_23, %c32] : memref<8x128xf32, #tpu.memory_space<vmem>>, vector<8x32xf32>
    tpu.vector_store %arg9[%c0_23, %c32], %76 {strides = array<i32>} : memref<8x128xf32, #tpu.memory_space<vmem>>, vector<8x32xf32>,
    %78 = vector.extract_strided_slice %33 {offsets = [0, 64], sizes = [8, 32], strides = [1, 1]} : vector<8x128xbf16> to vector<8x32xbf16>
    %79 = vector.extract_strided_slice %34 {offsets = [0, 64], sizes = [8, 32], strides = [1, 1]} : vector<8x128xbf16> to vector<8x32xbf16>
    %80 = vector.extract_strided_slice %35 {offsets = [0, 64], sizes = [8, 32], strides = [1, 1]} : vector<8x128xbf16> to vector<8x32xbf16>
    %cst_24 = arith.constant dense<0.000000e+00> : vector<8x8xf32>
    %81 = tpu.matmul %78, %79, %cst_24 {dimension_numbers = #tpu.dot_dimension_numbers<[1], [1], [0], [0], [0, 0, 1, 0], [], []>} : vector<8x32xbf16>, vector<8x32xbf16>, vector<8x8xf32> -> vector<8x8xf32>
    %cst_25 = arith.constant 0.176776692 : f32
    %82 = vector.broadcast %cst_25 : f32 to vector<8x8xf32>
    %83 = arith.mulf %81, %82 : vector<8x8xf32>
    %cst_26 = arith.constant -1.000000e+30 : f32
    %84 = vector.broadcast %cst_26 : f32 to vector<8x8xf32>
    %85 = arith.select %32, %83, %84 : vector<8x8xi1>, vector<8x8xf32>
    %cst_27 = arith.constant dense<0xFF800000> : vector<8xf32>
    %86 = vector.multi_reduction <maximumf>, %85, %cst_27 [1] : vector<8x8xf32> to vector<8xf32>
    %87 = vector.shape_cast %86 : vector<8xf32> to vector<8x1xf32>
    %88 = vector.broadcast %87 : vector<8x1xf32> to vector<8x8xf32>
    %89 = arith.subf %85, %88 : vector<8x8xf32>
    %90 = math.exp %89 : vector<8x8xf32>
    %cst_28 = arith.constant dense<0.000000e+00> : vector<8xf32>
    %91 = vector.multi_reduction <add>, %90, %cst_28 [1] : vector<8x8xf32> to vector<8xf32>
    %92 = vector.shape_cast %91 : vector<8xf32> to vector<8x1xf32>
    %93 = tpu.reciprocal %92 {approx = true} : vector<8x1xf32> -> vector<8x1xf32>
    %94 = vector.broadcast %93 : vector<8x1xf32> to vector<8x8xf32>
    %95 = arith.mulf %90, %94 : vector<8x8xf32>
    %96 = arith.truncf %95 : vector<8x8xf32> to vector<8x8xbf16>
    %cst_29 = arith.constant dense<0.000000e+00> : vector<8x32xf32>
    %97 = tpu.matmul %96, %80, %cst_29 {dimension_numbers = #tpu.dot_dimension_numbers<[1], [0], [0], [1], [0, 0, 1, 1], [], []>} : vector<8x8xbf16>, vector<8x32xbf16>, vector<8x32xf32> -> vector<8x32xf32>
    %c0_30 = arith.constant 0 : index
    %c64 = arith.constant 64 : index
    %98 = vector.load %arg9[%c0_30, %c64] : memref<8x128xf32, #tpu.memory_space<vmem>>, vector<8x32xf32>
    tpu.vector_store %arg9[%c0_30, %c64], %97 {strides = array<i32>} : memref<8x128xf32, #tpu.memory_space<vmem>>, vector<8x32xf32>,
    %99 = vector.extract_strided_slice %33 {offsets = [0, 96], sizes = [8, 32], strides = [1, 1]} : vector<8x128xbf16> to vector<8x32xbf16>
    %100 = vector.extract_strided_slice %34 {offsets = [0, 96], sizes = [8, 32], strides = [1, 1]} : vector<8x128xbf16> to vector<8x32xbf16>
    %101 = vector.extract_strided_slice %35 {offsets = [0, 96], sizes = [8, 32], strides = [1, 1]} : vector<8x128xbf16> to vector<8x32xbf16>
    %cst_31 = arith.constant dense<0.000000e+00> : vector<8x8xf32>
    %102 = tpu.matmul %99, %100, %cst_31 {dimension_numbers = #tpu.dot_dimension_numbers<[1], [1], [0], [0], [0, 0, 1, 0], [], []>} : vector<8x32xbf16>, vector<8x32xbf16>, vector<8x8xf32> -> vector<8x8xf32>
    %cst_32 = arith.constant 0.176776692 : f32
    %103 = vector.broadcast %cst_32 : f32 to vector<8x8xf32>
    %104 = arith.mulf %102, %103 : vector<8x8xf32>
    %cst_33 = arith.constant -1.000000e+30 : f32
    %105 = vector.broadcast %cst_33 : f32 to vector<8x8xf32>
    %106 = arith.select %32, %104, %105 : vector<8x8xi1>, vector<8x8xf32>
    %cst_34 = arith.constant dense<0xFF800000> : vector<8xf32>
    %107 = vector.multi_reduction <maximumf>, %106, %cst_34 [1] : vector<8x8xf32> to vector<8xf32>
    %108 = vector.shape_cast %107 : vector<8xf32> to vector<8x1xf32>
    %109 = vector.broadcast %108 : vector<8x1xf32> to vector<8x8xf32>
    %110 = arith.subf %106, %109 : vector<8x8xf32>
    %111 = math.exp %110 : vector<8x8xf32>
    %cst_35 = arith.constant dense<0.000000e+00> : vector<8xf32>
    %112 = vector.multi_reduction <add>, %111, %cst_35 [1] : vector<8x8xf32> to vector<8xf32>
    %113 = vector.shape_cast %112 : vector<8xf32> to vector<8x1xf32>
    %114 = tpu.reciprocal %113 {approx = true} : vector<8x1xf32> -> vector<8x1xf32>
    %115 = vector.broadcast %114 : vector<8x1xf32> to vector<8x8xf32>
    %116 = arith.mulf %111, %115 : vector<8x8xf32>
    %117 = arith.truncf %116 : vector<8x8xf32> to vector<8x8xbf16>
    %cst_36 = arith.constant dense<0.000000e+00> : vector<8x32xf32>
    %118 = tpu.matmul %117, %101, %cst_36 {dimension_numbers = #tpu.dot_dimension_numbers<[1], [0], [0], [1], [0, 0, 1, 1], [], []>} : vector<8x8xbf16>, vector<8x32xbf16>, vector<8x32xf32> -> vector<8x32xf32>
    %c0_37 = arith.constant 0 : index
    %c96 = arith.constant 96 : index
    %119 = vector.load %arg9[%c0_37, %c96] : memref<8x128xf32, #tpu.memory_space<vmem>>, vector<8x32xf32>
    tpu.vector_store %arg9[%c0_37, %c96], %118 {strides = array<i32>} : memref<8x128xf32, #tpu.memory_space<vmem>>, vector<8x32xf32>,
    %c0_38 = arith.constant 0 : index
    %c0_39 = arith.constant 0 : index
    %120 = vector.load %arg9[%c0_38, %c0_39] : memref<8x128xf32, #tpu.memory_space<vmem>>, vector<8x128xf32>
    %121 = arith.truncf %120 : vector<8x128xf32> to vector<8x128xbf16>
    %c0_40 = arith.constant 0 : index
    %c0_41 = arith.constant 0 : index
    %c0_42 = arith.constant 0 : index
    %122 = vector.load %arg4[%c0_40, %c0_41, %c0_42] : memref<1x128x128xbf16, #tpu.memory_space<vmem>>, vector<1x128x128xbf16>
    %123 = vector.shape_cast %122 : vector<1x128x128xbf16> to vector<128x128xbf16>
    %cst_43 = arith.constant dense<0.000000e+00> : vector<8x128xf32>
    %124 = tpu.matmul %121, %123, %cst_43 {dimension_numbers = #tpu.dot_dimension_numbers<[1], [0], [0], [1], [0, 0, 1, 1], [], []>} : vector<8x128xbf16>, vector<128x128xbf16>, vector<8x128xf32> -> vector<8x128xf32>
    %125 = vector.broadcast %10 : vector<1x128xf32> to vector<8x128xf32>
    %126 = arith.addf %124, %125 : vector<8x128xf32>
    %127 = arith.addf %4, %126 : vector<8x128xf32>
    %cst_44 = arith.constant dense<0.000000e+00> : vector<8xf32>
    %128 = vector.multi_reduction <add>, %127, %cst_44 [1] : vector<8x128xf32> to vector<8xf32>
    %129 = vector.shape_cast %128 : vector<8xf32> to vector<8x1xf32>
    %cst_45 = arith.constant 1.280000e+02 : f32
    %130 = vector.broadcast %cst_45 : f32 to vector<8x1xf32>
    %131 = arith.divf %129, %130 : vector<8x1xf32>
    %132 = vector.broadcast %131 : vector<8x1xf32> to vector<8x128xf32>
    %133 = arith.subf %127, %132 : vector<8x128xf32>
    %134 = arith.mulf %133, %133 : vector<8x128xf32>
    %cst_46 = arith.constant dense<0.000000e+00> : vector<8xf32>
    %135 = vector.multi_reduction <add>, %134, %cst_46 [1] : vector<8x128xf32> to vector<8xf32>
    %136 = vector.shape_cast %135 : vector<8xf32> to vector<8x1xf32>
    %cst_47 = arith.constant 1.280000e+02 : f32
    %137 = vector.broadcast %cst_47 : f32 to vector<8x1xf32>
    %138 = arith.divf %136, %137 : vector<8x1xf32>
    %139 = vector.broadcast %131 : vector<8x1xf32> to vector<8x128xf32>
    %140 = arith.subf %127, %139 : vector<8x128xf32>
    %cst_48 = arith.constant 9.99999974E-6 : f32
    %141 = vector.broadcast %cst_48 : f32 to vector<8x1xf32>
    %142 = arith.addf %138, %141 : vector<8x1xf32>
    %143 = math.rsqrt %142 : vector<8x1xf32>
    %144 = vector.broadcast %143 : vector<8x1xf32> to vector<8x128xf32>
    %145 = arith.mulf %140, %144 : vector<8x128xf32>
    %146 = vector.broadcast %12 : vector<1x128xf32> to vector<8x128xf32>
    %147 = arith.mulf %145, %146 : vector<8x128xf32>
    %148 = vector.broadcast %13 : vector<1x128xf32> to vector<8x128xf32>
    %149 = arith.addf %147, %148 : vector<8x128xf32>
    %150 = arith.truncf %149 : vector<8x128xf32> to vector<8x128xbf16>
    %c0_49 = arith.constant 0 : index
    %c0_50 = arith.constant 0 : index
    %c0_51 = arith.constant 0 : index
    %151 = vector.load %arg5[%c0_49, %c0_50, %c0_51] : memref<1x128x512xbf16, #tpu.memory_space<vmem>>, vector<1x128x512xbf16>
    %152 = vector.shape_cast %151 : vector<1x128x512xbf16> to vector<128x512xbf16>
    %cst_52 = arith.constant dense<0.000000e+00> : vector<8x512xf32>
    %153 = tpu.matmul %150, %152, %cst_52 {dimension_numbers = #tpu.dot_dimension_numbers<[1], [0], [0], [1], [0, 0, 1, 1], [], []>} : vector<8x128xbf16>, vector<128x512xbf16>, vector<8x512xf32> -> vector<8x512xf32>
    %154 = vector.broadcast %16 : vector<1x512xf32> to vector<8x512xf32>
    %155 = arith.addf %153, %154 : vector<8x512xf32>
    %cst_53 = arith.constant 5.000000e-01 : f32
    %156 = vector.broadcast %cst_53 : f32 to vector<8x512xf32>
    %157 = arith.mulf %156, %155 : vector<8x512xf32>
    %cst_54 = arith.constant 4.471500e-02 : f32
    %158 = vector.broadcast %cst_54 : f32 to vector<8x512xf32>
    %159 = arith.mulf %158, %155 : vector<8x512xf32>
    %160 = arith.mulf %159, %155 : vector<8x512xf32>
    %161 = arith.mulf %160, %155 : vector<8x512xf32>
    %162 = arith.addf %155, %161 : vector<8x512xf32>
    %cst_55 = arith.constant 0.797884583 : f32
    %163 = vector.broadcast %cst_55 : f32 to vector<8x512xf32>
    %164 = arith.mulf %163, %162 : vector<8x512xf32>
    %165 = math.tanh %164 : vector<8x512xf32>
    %cst_56 = arith.constant 1.000000e+00 : f32
    %166 = vector.broadcast %cst_56 : f32 to vector<8x512xf32>
    %167 = arith.addf %166, %165 : vector<8x512xf32>
    %168 = arith.mulf %157, %167 : vector<8x512xf32>
    %169 = arith.truncf %168 : vector<8x512xf32> to vector<8x512xbf16>
    %c0_57 = arith.constant 0 : index
    %c0_58 = arith.constant 0 : index
    %c0_59 = arith.constant 0 : index
    %170 = vector.load %arg6[%c0_57, %c0_58, %c0_59] : memref<1x512x128xbf16, #tpu.memory_space<vmem>>, vector<1x512x128xbf16>
    %171 = vector.shape_cast %170 : vector<1x512x128xbf16> to vector<512x128xbf16>
    %cst_60 = arith.constant dense<0.000000e+00> : vector<8x128xf32>
    %172 = tpu.matmul %169, %171, %cst_60 {dimension_numbers = #tpu.dot_dimension_numbers<[1], [0], [0], [1], [0, 0, 1, 1], [], []>} : vector<8x512xbf16>, vector<512x128xbf16>, vector<8x128xf32> -> vector<8x128xf32>
    %173 = vector.broadcast %11 : vector<1x128xf32> to vector<8x128xf32>
    %174 = arith.addf %172, %173 : vector<8x128xf32>
    %175 = arith.addf %149, %174 : vector<8x128xf32>
    %cst_61 = arith.constant dense<0.000000e+00> : vector<8xf32>
    %176 = vector.multi_reduction <add>, %175, %cst_61 [1] : vector<8x128xf32> to vector<8xf32>
    %177 = vector.shape_cast %176 : vector<8xf32> to vector<8x1xf32>
    %cst_62 = arith.constant 1.280000e+02 : f32
    %178 = vector.broadcast %cst_62 : f32 to vector<8x1xf32>
    %179 = arith.divf %177, %178 : vector<8x1xf32>
    %180 = vector.broadcast %179 : vector<8x1xf32> to vector<8x128xf32>
    %181 = arith.subf %175, %180 : vector<8x128xf32>
    %182 = arith.mulf %181, %181 : vector<8x128xf32>
    %cst_63 = arith.constant dense<0.000000e+00> : vector<8xf32>
    %183 = vector.multi_reduction <add>, %182, %cst_63 [1] : vector<8x128xf32> to vector<8xf32>
    %184 = vector.shape_cast %183 : vector<8xf32> to vector<8x1xf32>
    %cst_64 = arith.constant 1.280000e+02 : f32
    %185 = vector.broadcast %cst_64 : f32 to vector<8x1xf32>
    %186 = arith.divf %184, %185 : vector<8x1xf32>
    %187 = vector.broadcast %179 : vector<8x1xf32> to vector<8x128xf32>
    %188 = arith.subf %175, %187 : vector<8x128xf32>
    %cst_65 = arith.constant 9.99999974E-6 : f32
    %189 = vector.broadcast %cst_65 : f32 to vector<8x1xf32>
    %190 = arith.addf %186, %189 : vector<8x1xf32>
    %191 = math.rsqrt %190 : vector<8x1xf32>
    %192 = vector.broadcast %191 : vector<8x1xf32> to vector<8x128xf32>
    %193 = arith.mulf %188, %192 : vector<8x128xf32>
    %194 = vector.broadcast %14 : vector<1x128xf32> to vector<8x128xf32>
    %195 = arith.mulf %193, %194 : vector<8x128xf32>
    %196 = vector.broadcast %15 : vector<1x128xf32> to vector<8x128xf32>
    %197 = arith.addf %195, %196 : vector<8x128xf32>
    %c0_66 = arith.constant 0 : index
    %c0_67 = arith.constant 0 : index
    %c0_68 = arith.constant 0 : index
    %198 = vector.load %arg8[%c0_66, %c0_67, %c0_68] : memref<1x8x128xf32, #tpu.memory_space<vmem>>, vector<1x8x128xf32>
    %199 = vector.shape_cast %198 : vector<1x8x128xf32> to vector<8x128xf32>
    %200 = vector.shape_cast %197 : vector<8x128xf32> to vector<1x8x128xf32>
    tpu.vector_store %arg8[%c0_66, %c0_67, %c0_68], %200 {strides = array<i32>} : memref<1x8x128xf32, #tpu.memory_space<vmem>>, vector<1x8x128xf32>,
    return
  }
  func.func @transform_0(%arg0: i32, %arg1: i32) -> (i32, i32, i32) {
    %c0_i32 = arith.constant 0 : i32
    %c0_i32_0 = arith.constant 0 : i32
    %c0_i32_1 = arith.constant 0 : i32
    return %arg0, %c0_i32, %c0_i32_0 : i32, i32, i32
  }
  func.func @transform_1(%arg0: i32, %arg1: i32) -> (i32, i32, i32) {
    %c0_i32 = arith.constant 0 : i32
    %c0_i32_0 = arith.constant 0 : i32
    %c0_i32_1 = arith.constant 0 : i32
    return %arg1, %c0_i32, %c0_i32_0 : i32, i32, i32
  }
  func.func @transform_2(%arg0: i32, %arg1: i32) -> (i32, i32, i32) {
    %c0_i32 = arith.constant 0 : i32
    %c0_i32_0 = arith.constant 0 : i32
    %c0_i32_1 = arith.constant 0 : i32
    return %arg1, %c0_i32, %c0_i32_0 : i32, i32, i32
  }
  func.func @transform_3(%arg0: i32, %arg1: i32) -> (i32, i32, i32) {
    %c0_i32 = arith.constant 0 : i32
    %c0_i32_0 = arith.constant 0 : i32
    %c0_i32_1 = arith.constant 0 : i32
    return %arg1, %c0_i32, %c0_i32_0 : i32, i32, i32
  }
  func.func @transform_4(%arg0: i32, %arg1: i32) -> (i32, i32, i32) {
    %c0_i32 = arith.constant 0 : i32
    %c0_i32_0 = arith.constant 0 : i32
    %c0_i32_1 = arith.constant 0 : i32
    return %arg1, %c0_i32, %c0_i32_0 : i32, i32, i32
  }
  func.func @transform_5(%arg0: i32, %arg1: i32) -> (i32, i32, i32) {
    %c0_i32 = arith.constant 0 : i32
    %c0_i32_0 = arith.constant 0 : i32
    %c0_i32_1 = arith.constant 0 : i32
    return %arg1, %c0_i32, %c0_i32_0 : i32, i32, i32
  }
  func.func @transform_6(%arg0: i32, %arg1: i32) -> (i32, i32, i32) {
    %c0_i32 = arith.constant 0 : i32
    %c0_i32_0 = arith.constant 0 : i32
    %c0_i32_1 = arith.constant 0 : i32
    return %arg0, %c0_i32, %c0_i32_0 : i32, i32, i32
  }
}

module attributes {stable_mosaic.version = 11 : i64} {
  func.func @logits_kernel(%arg0: i32, %arg1: i32, %arg2: memref<1x8x128xf32, #tpu.memory_space<vmem>>, %arg3: memref<128x128xbf16, #tpu.memory_space<vmem>>, %arg4: memref<1x8x128xf32, #tpu.memory_space<vmem>>) attributes {dimension_semantics = [#tpu.dimension_semantics<parallel>, #tpu.dimension_semantics<arbitrary>], iteration_bounds = array<i64: 2, 1>, scalar_prefetch = 0 : i64, scratch_operands = 0 : i64, tpu.core_type = #tpu.core_type<tc>, window_params = [{transform_indices = @transform_0, window_bounds = array<i64: 1, 8, 128>}, {transform_indices = @transform_1, window_bounds = array<i64: 128, 128>}, {transform_indices = @transform_2, window_bounds = array<i64: 1, 8, 128>}]} {
    %c0 = arith.constant 0 : index
    %c0_0 = arith.constant 0 : index
    %c0_1 = arith.constant 0 : index
    %0 = vector.load %arg2[%c0, %c0_0, %c0_1] : memref<1x8x128xf32, #tpu.memory_space<vmem>>, vector<1x8x128xf32>
    %1 = vector.shape_cast %0 : vector<1x8x128xf32> to vector<8x128xf32>
    %2 = arith.truncf %1 : vector<8x128xf32> to vector<8x128xbf16>
    %c0_2 = arith.constant 0 : index
    %c0_3 = arith.constant 0 : index
    %3 = vector.load %arg3[%c0_2, %c0_3] : memref<128x128xbf16, #tpu.memory_space<vmem>>, vector<128x128xbf16>
    %cst = arith.constant dense<0.000000e+00> : vector<8x128xf32>
    %4 = tpu.matmul %2, %3, %cst {dimension_numbers = #tpu.dot_dimension_numbers<[1], [1], [0], [0], [0, 0, 1, 0], [], []>} : vector<8x128xbf16>, vector<128x128xbf16>, vector<8x128xf32> -> vector<8x128xf32>
    %c0_4 = arith.constant 0 : index
    %c0_5 = arith.constant 0 : index
    %c0_6 = arith.constant 0 : index
    %5 = vector.load %arg4[%c0_4, %c0_5, %c0_6] : memref<1x8x128xf32, #tpu.memory_space<vmem>>, vector<1x8x128xf32>
    %6 = vector.shape_cast %5 : vector<1x8x128xf32> to vector<8x128xf32>
    %7 = vector.shape_cast %4 : vector<8x128xf32> to vector<1x8x128xf32>
    tpu.vector_store %arg4[%c0_4, %c0_5, %c0_6], %7 {strides = array<i32>} : memref<1x8x128xf32, #tpu.memory_space<vmem>>, vector<1x8x128xf32>,
    return
  }
  func.func @transform_0(%arg0: i32, %arg1: i32) -> (i32, i32, i32) {
    %c0_i32 = arith.constant 0 : i32
    %c0_i32_0 = arith.constant 0 : i32
    %c0_i32_1 = arith.constant 0 : i32
    return %arg0, %c0_i32, %c0_i32_0 : i32, i32, i32
  }
  func.func @transform_1(%arg0: i32, %arg1: i32) -> (i32, i32) {
    %c0_i32 = arith.constant 0 : i32
    %c0_i32_0 = arith.constant 0 : i32
    return %arg1, %c0_i32 : i32, i32
  }
  func.func @transform_2(%arg0: i32, %arg1: i32) -> (i32, i32, i32) {
    %c0_i32 = arith.constant 0 : i32
    %c0_i32_0 = arith.constant 0 : i32
    return %arg0, %c0_i32, %arg1 : i32, i32, i32
  }
}

</mosaic_0001>

<llo_original>
// kernel: gpt_forward.3
$region0: #{gpt_forward.3}
  #allocation0 [shape = 'u32[]', space=smem, size = 0x4, offset = 0x4, fixed_abs, tag = 'smem constant byte address 0x4 - core index']
  #allocation1 [shape = 'u32[72,128]{1,0:T(1,128)}', space=vmem, size = 0x9000, scoped, tag = 'internal scratch']
  %s0 = inlined_call_operand.vmem [shape: f32[2,8,128], index: 0, kind: input, shape index: {}]
  %s1 = inlined_call_operand.hbm [shape: bf16[128,128], index: 1, kind: input, shape index: {}]
  %s2 = inlined_call_operand.hbm [shape: f32[2,8,128], index: 2, kind: output, shape index: {}]
  %s3 = sld [smem:[#allocation0]]
  $region45: #{gpt_forward.3} parent=0
    _
  %s5 = ssub.s32 1, %s3
  %s6 = scalar_select 0, %s5, %s3
  $region1: #{gpt_forward.3} parent=0
    #allocation2 [shape = 'u8[32768]{0}', space=vmem, size = 0x8000, scoped, tag = 'input window, operand 1, single buffered']
    #allocation3 [shape = 's32[2]{0}', space=sflag, size = 0x8, scoped, tag = 'scoped memory for gpt_forward.3']
    #allocation4 [shape = 's32[2]{0}', space=sflag, size = 0x8, scoped, tag = 'scoped memory for gpt_forward.3']
    #allocation5 [shape = 'u8[8192]{0}', space=vmem, size = 0x2000, scoped, tag = 'output window, operand 0']
    %7 = vsyncpa [#allocation3], 0
    %8 = vsyncpa [#allocation4], 0
    %s9 = scalar_lea.sflag [#allocation4], 1
    %10 = vsyncpa %s9, 0
    loop: start=0, step=1, limit=4
    $region2: #{gpt_forward.3} parent=1 // loop_pre_header
      _
    $region3: #{gpt_forward.3} parent=1 // loop_header
      %s12 = sphi 0, %s16
      %p13 = scmp.ge.s32.totalorder %s12, 4
      %s19 = sphi 0, %s31
      %s20 = sphi 0, %s27
      %s21 = sphi 0, %s19
      %s22 = sphi 0, %s20
      %s23 = sphi 0, %s21
      %s24 = sphi 0, %s22
      %s34 = sphi 0, %s36
      %s37 = sphi 0, %s34
      %s38 = sphi 0, %s37
      %s54 = sphi 0, %s38
      %s60 = sphi 0, %s62
      %s63 = sphi 0, %s60
      %s64 = sphi 0, %s63
      %s80 = sphi 0, %s64
      %s88 = sphi 0, %s90
      %s91 = sphi 0, %s88
      %s92 = sphi 0, %s91
      %s108 = sphi 0, %s92
    $region4: #{gpt_forward.3} parent=1 // loop_header_branch
      %15 = sbr.rel (%p13) target = $region8
    $region5: #{gpt_forward.3} parent=1 // loop_body
      %s17 = ssub.s32 %s12, 1
      %s18 = ssub.s32 %s12, 2
      %s25 = sadd.s32 1, %s20
      %p26 = scmp.ge.s32.totalorder %s25, 1
      %s27 = scalar_select %p26, 0, %s25
      %s28 = sadd.s32 1, %s19
      %s29 = scalar_select %p26, %s28, %s19
      %p30 = scmp.ge.s32.totalorder %s29, 2
      %s31 = scalar_select %p30, 0, %s29
      %s32 = ssub.s32 %s19, %s31
      %p33 = scmp.eq.s32.totalorder %s32, 0
      %s35 = sadd.s32 %s34, 1
      %s36 = scalar_select %p33, %s34, %s35
      %p39 = pneg %p33
      %p40 = scmp.eq.s32.totalorder %s12, 1
      %p41 = por %p39, %p40
      %p42 = scmp.ne.s32.totalorder %s34, %s37
      %p43 = scmp.eq.s32.totalorder %s12, 0
      %p44 = por %p42, %p43
      %p45 = scmp.ne.s32.totalorder %s34, %s37
      %p46 = scmp.eq.s32.totalorder %s17, 1
      %p47 = por %p45, %p46
      %p48 = scmp.ne.s32.totalorder %s37, %s38
      %p49 = scmp.eq.s32.totalorder %s17, 0
      %p50 = por %p48, %p49
      %p51 = scmp.ne.s32.totalorder %s37, %s38
      %p52 = scmp.eq.s32.totalorder %s18, 1
      %p53 = por %p51, %p52
      %p55 = scmp.ne.s32.totalorder %s38, %s54
      %p56 = scmp.eq.s32.totalorder %s18, 0
      %p57 = por %p55, %p56
      %s58 = ssub.s32 %s20, %s27
      %p59 = scmp.eq.s32.totalorder %s58, 0
      %s61 = sadd.s32 %s60, 1
      %s62 = scalar_select %p59, %s60, %s61
      %p65 = pneg %p59
      %p66 = scmp.eq.s32.totalorder %s12, 1
      %p67 = por %p65, %p66
      %p68 = scmp.ne.s32.totalorder %s60, %s63
      %p69 = scmp.eq.s32.totalorder %s12, 0
      %p70 = por %p68, %p69
      %p71 = scmp.ne.s32.totalorder %s60, %s63
      %p72 = scmp.eq.s32.totalorder %s17, 1
      %p73 = por %p71, %p72
      %p74 = scmp.ne.s32.totalorder %s63, %s64
      %p75 = scmp.eq.s32.totalorder %s17, 0
      %p76 = por %p74, %p75
      %p77 = scmp.ne.s32.totalorder %s63, %s64
      %p78 = scmp.eq.s32.totalorder %s18, 1
      %p79 = por %p77, %p78
      %p81 = scmp.ne.s32.totalorder %s64, %s80
      %p82 = scmp.eq.s32.totalorder %s18, 0
      %p83 = por %p81, %p82
      %s84 = ssub.s32 %s19, %s31
      %s85 = ssub.s32 %s20, %s27
      %s86 = sor.u32 %s84, %s85
      %p87 = scmp.eq.s32.totalorder %s86, 0
      %s89 = sadd.s32 %s88, 1
      %s90 = scalar_select %p87, %s88, %s89
      %p93 = pneg %p87
      %p94 = scmp.eq.s32.totalorder %s12, 1
      %p95 = por %p93, %p94
      %p96 = scmp.ne.s32.totalorder %s88, %s91
      %p97 = scmp.eq.s32.totalorder %s12, 0
      %p98 = por %p96, %p97
      %p99 = scmp.ne.s32.totalorder %s88, %s91
      %p100 = scmp.eq.s32.totalorder %s17, 1
      %p101 = por %p99, %p100
      %p102 = scmp.ne.s32.totalorder %s91, %s92
      %p103 = scmp.eq.s32.totalorder %s17, 0
      %p104 = por %p102, %p103
      %p105 = scmp.ne.s32.totalorder %s91, %s92
      %p106 = scmp.eq.s32.totalorder %s18, 1
      %p107 = por %p105, %p106
      %p109 = scmp.ne.s32.totalorder %s92, %s108
      %p110 = scmp.eq.s32.totalorder %s18, 0
      %p111 = por %p109, %p110
      %p112 = scmp.le.s32.totalorder 1, %s12
      %p113 = scmp.lt.s32.totalorder %s12, 3
      %p114 = pnand %p112, %p113
      %p115 = pneg %p114
      // Predicated region
      $region9: #{gpt_forward.3} parent=5 // pred_check
        _
      $region10: #{gpt_forward.3} parent=5 // pred_check_branch
        %117 = sbr.rel (%p114) target = $region12
      $region11: #{gpt_forward.3} parent=5 // pred_region
        %s118 = ssub.s32 %s12, 1
        // Predicated region
        $region13: #{gpt_forward.3} parent=11 // pred_check
          %p119 = pneg %p76
        $region14: #{gpt_forward.3} parent=11 // pred_check_branch
          %121 = sbr.rel (%p119) target = $region16
        $region15: #{gpt_forward.3} parent=11 // pred_region
          %s122 = smul.u32 16, %s22
          %124 = vsyncadd [#allocation3], 0
          %s125 = smul.addr %s122, 4
          %s126 = scalar_lea.hbm %s1, %s125
          %s127 = sshll.u32 %s126, 4
          %s128 = int_to_ptr.hbm [resolvable:$true] %s127
          %s129 = sshll.u32 [#allocation2], 4
          %s130 = int_to_ptr.vmem [resolvable:$true] %s129
          %135 = dma.hbm_to_vmem [thread:$0]  %s128, 1024, %s130, [#allocation3], 64, 64, 4
        $region16: #{gpt_forward.3} parent=11 // pred_fallthru
          _
      $region12: #{gpt_forward.3} parent=5 // pred_fallthru
        _
      %p136 = scmp.lt.s32.totalorder %s12, 2
      // Predicated region
      $region17: #{gpt_forward.3} parent=5 // pred_check
        %p137 = pneg %p136
      $region18: #{gpt_forward.3} parent=5 // pred_check_branch
        %139 = sbr.rel (%p137) target = $region20
      $region19: #{gpt_forward.3} parent=5 // pred_region
        // Predicated region
        $region21: #{gpt_forward.3} parent=19 // pred_check
          %p140 = pneg %p44
        $region22: #{gpt_forward.3} parent=19 // pred_check_branch
          %142 = sbr.rel (%p140) target = $region24
        $region23: #{gpt_forward.3} parent=19 // pred_region
          %p143 = scmp.lt.s32.totalorder %s19, 1
          %s144 = scalar_select %p143, %s19, 1
          %s145 = smul.addr %s144, 8
          %s146 = scalar_lea.vmem %s0, %s145
        $region24: #{gpt_forward.3} parent=19 // pred_fallthru
          _
      $region20: #{gpt_forward.3} parent=5 // pred_fallthru
        _
      %p147 = scmp.le.s32.totalorder 1, %s12
      %p148 = scmp.lt.s32.totalorder %s12, 3
      %p149 = pnand %p147, %p148
      %p150 = pneg %p149
      // Predicated region
      $region25: #{gpt_forward.3} parent=5 // pred_check
        _
      $region26: #{gpt_forward.3} parent=5 // pred_check_branch
        %152 = sbr.rel (%p149) target = $region28
      $region27: #{gpt_forward.3} parent=5 // pred_region
        %s153 = ssub.s32 %s12, 1
        // Predicated region
        $region29: #{gpt_forward.3} parent=27 // pred_check
          %p154 = pneg %p76
        $region30: #{gpt_forward.3} parent=27 // pred_check_branch
          %156 = sbr.rel (%p154) target = $region32
        $region31: #{gpt_forward.3} parent=27 // pred_region
          %158 = dma.done [#allocation3], 1024
        $region32: #{gpt_forward.3} parent=27 // pred_fallthru
          _
        %p159 = scmp.lt.s32.totalorder %s21, 1
        %s160 = scalar_select %p159, %s21, 1
        %s161 = smul.addr %s160, 8
        %s162 = scalar_lea.vmem %s0, %s161
        %p163 = pneg %p50
        %p164 = pneg %p47
        %p165 = pneg %p76
        %p166 = pneg %p73
        %p167 = pneg %p104
        %p168 = pneg %p101
        %s169 = sand.u32 %s91, 1
        %s170 = scalar_lea.sflag [#allocation4], %s169
        %s171 = sand.u32 %s91, 1
        %s172 = smul.addr %s171, 8
        %s173 = scalar_lea.vmem [#allocation5], %s172
        %p174 = scmp.lt.s32.totalorder %s21, 1
        %s175 = scalar_select %p174, %s21, 1
        %s176 = smul.addr %s175, 8
        %s177 = scalar_lea.vmem %s0, %s176
        %s178 = smul.u32 16, %s22
        %v179 = vld [vmem:[%s177] sm:$0xff]
        %v180 = vpack.c.bf16 %v179, %v179
        %v181 = vld [vmem:[#allocation2] sm:$0xf]
        %v182 = vld [vmem:[#allocation2 + $0x4] sm:$0xf]
        %v183 = vld [vmem:[#allocation2 + $0x8] sm:$0xf]
        %v184 = vld [vmem:[#allocation2 + $0xc] sm:$0xf]
        %v185 = vld [vmem:[#allocation2 + $0x10] sm:$0xf]
        %v186 = vld [vmem:[#allocation2 + $0x14] sm:$0xf]
        %v187 = vld [vmem:[#allocation2 + $0x18] sm:$0xf]
        %v188 = vld [vmem:[#allocation2 + $0x1c] sm:$0xf]
        %v189 = vld [vmem:[#allocation2 + $0x20] sm:$0xf]
        %v190 = vld [vmem:[#allocation2 + $0x24] sm:$0xf]
        %v191 = vld [vmem:[#allocation2 + $0x28] sm:$0xf]
        %v192 = vld [vmem:[#allocation2 + $0x2c] sm:$0xf]
        %v193 = vld [vmem:[#allocation2 + $0x30] sm:$0xf]
        %v194 = vld [vmem:[#allocation2 + $0x34] sm:$0xf]
        %v195 = vld [vmem:[#allocation2 + $0x38] sm:$0xf]
        %v196 = vld [vmem:[#allocation2 + $0x3c] sm:$0xf]
        %v213 = vunpack.c.l.b16 %v181
        %v214 = vunpack.c.l.b16 %v182
        %v215 = vunpack.c.l.b16 %v183
        %v216 = vunpack.c.l.b16 %v184
        %v217 = vunpack.c.l.b16 %v185
        %v218 = vunpack.c.l.b16 %v186
        %v219 = vunpack.c.l.b16 %v187
        %v220 = vunpack.c.l.b16 %v188
        %v221 = vunpack.c.l.b16 %v189
        %v222 = vunpack.c.l.b16 %v190
        %v223 = vunpack.c.l.b16 %v191
        %v224 = vunpack.c.l.b16 %v192
        %v225 = vunpack.c.l.b16 %v193
        %v226 = vunpack.c.l.b16 %v194
        %v227 = vunpack.c.l.b16 %v195
        %v228 = vunpack.c.l.b16 %v196
        %v229 = vpack.c.b16 %v214, %v213
        %v230 = vpack.c.b16 %v216, %v215
        %v231 = vpack.c.b16 %v218, %v217
        %v232 = vpack.c.b16 %v220, %v219
        %v233 = vpack.c.b16 %v222, %v221
        %v234 = vpack.c.b16 %v224, %v223
        %v235 = vpack.c.b16 %v226, %v225
        %v236 = vpack.c.b16 %v228, %v227
        %245 = vmatpush.bf16.xpose.msra.mxu0 %v236
        %246 = vmatpush.bf16.xpose.msra.mxu0 %v235
        %247 = vmatpush.bf16.xpose.msra.mxu0 %v234
        %248 = vmatpush.bf16.xpose.msra.mxu0 %v233
        %249 = vmatpush.bf16.xpose.msra.mxu0 %v232
        %250 = vmatpush.bf16.xpose.msra.mxu0 %v231
        %251 = vmatpush.bf16.xpose.msra.mxu0 %v230
        %252 = vmatpush.bf16.xpose.msra.mxu0 %v229
        %253 = vmatmul.bf16.gmra.mxu0 %v180
        %v254 = vpop.f32.mrf.mxu0
        %v255 = vadd.f32 0.0, %v254
        %v256 = vpop.f32.mrf.mxu0
        %257 = vdwg.mxu0
        %258 = vst [vmem:[%s173] sm:$0xff] %v255
        %s259 = sand.u32 %s91, 1
        %s260 = scalar_lea.sflag [#allocation4], %s259
        %s261 = sand.u32 %s91, 1
        %s262 = smul.addr %s261, 8
        %s263 = scalar_lea.vmem [#allocation5], %s262
        // Predicated region
        $region33: #{gpt_forward.3} parent=27 // pred_check
          %p264 = pneg %p101
        $region34: #{gpt_forward.3} parent=27 // pred_check_branch
          %266 = sbr.rel (%p264) target = $region36
        $region35: #{gpt_forward.3} parent=27 // pred_region
          %268 = vsyncadd %s260, 0
          %s269 = sadd.s32 %s22, %s21
          %s270 = smul.addr %s269, 8
          %s271 = scalar_lea.hbm %s2, %s270
          %s273 = sshll.u32 %s263, 4
          %s274 = int_to_ptr.vmem [resolvable:$true] %s273
          %s275 = sshll.u32 %s271, 4
          %s276 = int_to_ptr.hbm [resolvable:$true] %s275
          %278 = dma.vmem_to_hbm [thread:$0]  %s274, 128, %s276, %s260
        $region36: #{gpt_forward.3} parent=27 // pred_fallthru
          _
      $region28: #{gpt_forward.3} parent=5 // pred_fallthru
        _
      %p279 = scmp.le.s32.totalorder 2, %s12
      // Predicated region
      $region37: #{gpt_forward.3} parent=5 // pred_check
        %p280 = pneg %p279
      $region38: #{gpt_forward.3} parent=5 // pred_check_branch
        %282 = sbr.rel (%p280) target = $region40
      $region39: #{gpt_forward.3} parent=5 // pred_region
        %s283 = ssub.s32 %s12, 2
        // Predicated region
        $region41: #{gpt_forward.3} parent=39 // pred_check
          %p284 = pneg %p107
        $region42: #{gpt_forward.3} parent=39 // pred_check_branch
          %286 = sbr.rel (%p284) target = $region44
        $region43: #{gpt_forward.3} parent=39 // pred_region
          %s287 = sand.u32 %s92, 1
          %s288 = scalar_lea.sflag [#allocation4], %s287
          %s289 = sand.u32 %s92, 1
          %s290 = smul.addr %s289, 8
          %s291 = scalar_lea.vmem [#allocation5], %s290
          %293 = dma.done %s288, 128
        $region44: #{gpt_forward.3} parent=39 // pred_fallthru
          _
      $region40: #{gpt_forward.3} parent=5 // pred_fallthru
        _
    $region6: #{gpt_forward.3} parent=1 // loop_footer
      %s16 = sadd.s32 1, %s12
    $region7: #{gpt_forward.3} parent=1 // loop_footer_branch
      %11 = sbr.rel target = $region3
    $region8: #{gpt_forward.3} parent=1 // loop_exit
      _
    %294 = vsyncpa [#allocation3], 1
    %s295 = scalar_lea.sflag [#allocation3], 1
    %296 = vsyncpa %s295, 1
    %297 = vsyncpa [#allocation4], 1
    %s298 = scalar_lea.sflag [#allocation4], 1
    %299 = vsyncpa %s298, 1

// kernel: gpt_forward.2
$region0: #{gpt_forward.2}
  #allocation0 [shape = 'u32[]', space=smem, size = 0x4, offset = 0x4, fixed_abs, tag = 'smem constant byte address 0x4 - core index']
  #allocation1 [shape = 'u32[72,128]{1,0:T(1,128)}', space=vmem, size = 0x9000, scoped, tag = 'internal scratch']
  #allocation2 [shape = 'f32[8,128]{1,0:T(8,128)}', space=vmem, size = 0x1000, scoped, tag = 'scratch operand']
  %s0 = inlined_call_operand.vmem [shape: f32[2,8,128], index: 0, kind: input, shape index: {}]
  %s1 = inlined_call_operand.hbm [shape: bf16[2,128,384], index: 1, kind: input, shape index: {}]
  %s2 = inlined_call_operand.vmem [shape: bf16[2,128,128], index: 2, kind: input, shape index: {}]
  %s3 = inlined_call_operand.hbm [shape: bf16[2,128,512], index: 3, kind: input, shape index: {}]
  %s4 = inlined_call_operand.hbm [shape: bf16[2,512,128], index: 4, kind: input, shape index: {}]
  %s5 = inlined_call_operand.hbm [shape: f32[2,16,512], index: 5, kind: input, shape index: {}]
  %s6 = inlined_call_operand.vmem [shape: f32[2,8,128], index: 6, kind: output, shape index: {}]
  %s7 = sld [smem:[#allocation0]]
  $region77: #{gpt_forward.2} parent=0
    _
  %s9 = ssub.s32 1, %s7
  %s10 = scalar_select 0, %s9, %s7
  $region1: #{gpt_forward.2} parent=0
    #allocation3 [shape = 'u8[196608]{0}', space=vmem, size = 0x30000, scoped, tag = 'input window, operand 1']
    #allocation4 [shape = 's32[2]{0}', space=sflag, size = 0x8, scoped, tag = 'scoped memory for gpt_forward.2']
    #allocation5 [shape = 'u8[262144]{0}', space=vmem, size = 0x40000, scoped, tag = 'input window, operand 3']
    #allocation6 [shape = 's32[2]{0}', space=sflag, size = 0x8, scoped, tag = 'scoped memory for gpt_forward.2']
    #allocation7 [shape = 'u8[262144]{0}', space=vmem, size = 0x40000, scoped, tag = 'input window, operand 4']
    #allocation8 [shape = 'u8[65536]{0}', space=vmem, size = 0x10000, scoped, tag = 'input window, operand 5']
    #allocation9 [shape = 's32[2]{0}', space=sflag, size = 0x8, scoped, tag = 'scoped memory for gpt_forward.2']
    %11 = vsyncpa [#allocation4], 0
    %s12 = scalar_lea.sflag [#allocation4], 1
    %13 = vsyncpa %s12, 0
    %14 = vsyncpa [#allocation6], 0
    %s15 = scalar_lea.sflag [#allocation6], 1
    %16 = vsyncpa %s15, 0
    %17 = vsyncpa [#allocation9], 0
    %s18 = scalar_lea.sflag [#allocation9], 1
    %19 = vsyncpa %s18, 0
    loop: start=0, step=1, limit=6
    $region2: #{gpt_forward.2} parent=1 // loop_pre_header
      _
    $region3: #{gpt_forward.2} parent=1 // loop_header
      %s21 = sphi 0, %s25
      %p22 = scmp.ge.s32.totalorder %s21, 6
      %s28 = sphi 0, %s40
      %s29 = sphi 0, %s36
      %s30 = sphi 0, %s28
      %s31 = sphi 0, %s29
      %s32 = sphi 0, %s30
      %s33 = sphi 0, %s31
      %s43 = sphi 0, %s45
      %s46 = sphi 0, %s43
      %s47 = sphi 0, %s46
      %s63 = sphi 0, %s47
      %s69 = sphi 0, %s71
      %s72 = sphi 0, %s69
      %s73 = sphi 0, %s72
      %s89 = sphi 0, %s73
      %s95 = sphi 0, %s97
      %s98 = sphi 0, %s95
      %s99 = sphi 0, %s98
      %s115 = sphi 0, %s99
      %s121 = sphi 0, %s123
      %s124 = sphi 0, %s121
      %s125 = sphi 0, %s124
      %s141 = sphi 0, %s125
      %s147 = sphi 0, %s149
      %s150 = sphi 0, %s147
      %s151 = sphi 0, %s150
      %s167 = sphi 0, %s151
      %s173 = sphi 0, %s175
      %s176 = sphi 0, %s173
      %s177 = sphi 0, %s176
      %s193 = sphi 0, %s177
      %s199 = sphi 0, %s201
      %s202 = sphi 0, %s199
      %s203 = sphi 0, %s202
      %s219 = sphi 0, %s203
    $region4: #{gpt_forward.2} parent=1 // loop_header_branch
      %24 = sbr.rel (%p22) target = $region8
    $region5: #{gpt_forward.2} parent=1 // loop_body
      %s26 = ssub.s32 %s21, 1
      %s27 = ssub.s32 %s21, 2
      %s34 = sadd.s32 1, %s29
      %p35 = scmp.ge.s32.totalorder %s34, 2
      %s36 = scalar_select %p35, 0, %s34
      %s37 = sadd.s32 1, %s28
      %s38 = scalar_select %p35, %s37, %s28
      %p39 = scmp.ge.s32.totalorder %s38, 2
      %s40 = scalar_select %p39, 0, %s38
      %s41 = ssub.s32 %s28, %s40
      %p42 = scmp.eq.s32.totalorder %s41, 0
      %s44 = sadd.s32 %s43, 1
      %s45 = scalar_select %p42, %s43, %s44
      %p48 = pneg %p42
      %p49 = scmp.eq.s32.totalorder %s21, 3
      %p50 = por %p48, %p49
      %p51 = scmp.ne.s32.totalorder %s43, %s46
      %p52 = scmp.eq.s32.totalorder %s21, 0
      %p53 = por %p51, %p52
      %p54 = scmp.ne.s32.totalorder %s43, %s46
      %p55 = scmp.eq.s32.totalorder %s26, 3
      %p56 = por %p54, %p55
      %p57 = scmp.ne.s32.totalorder %s46, %s47
      %p58 = scmp.eq.s32.totalorder %s26, 0
      %p59 = por %p57, %p58
      %p60 = scmp.ne.s32.totalorder %s46, %s47
      %p61 = scmp.eq.s32.totalorder %s27, 3
      %p62 = por %p60, %p61
      %p64 = scmp.ne.s32.totalorder %s47, %s63
      %p65 = scmp.eq.s32.totalorder %s27, 0
      %p66 = por %p64, %p65
      %s67 = ssub.s32 %s29, %s36
      %p68 = scmp.eq.s32.totalorder %s67, 0
      %s70 = sadd.s32 %s69, 1
      %s71 = scalar_select %p68, %s69, %s70
      %p74 = pneg %p68
      %p75 = scmp.eq.s32.totalorder %s21, 3
      %p76 = por %p74, %p75
      %p77 = scmp.ne.s32.totalorder %s69, %s72
      %p78 = scmp.eq.s32.totalorder %s21, 0
      %p79 = por %p77, %p78
      %p80 = scmp.ne.s32.totalorder %s69, %s72
      %p81 = scmp.eq.s32.totalorder %s26, 3
      %p82 = por %p80, %p81
      %p83 = scmp.ne.s32.totalorder %s72, %s73
      %p84 = scmp.eq.s32.totalorder %s26, 0
      %p85 = por %p83, %p84
      %p86 = scmp.ne.s32.totalorder %s72, %s73
      %p87 = scmp.eq.s32.totalorder %s27, 3
      %p88 = por %p86, %p87
      %p90 = scmp.ne.s32.totalorder %s73, %s89
      %p91 = scmp.eq.s32.totalorder %s27, 0
      %p92 = por %p90, %p91
      %s93 = ssub.s32 %s29, %s36
      %p94 = scmp.eq.s32.totalorder %s93, 0
      %s96 = sadd.s32 %s95, 1
      %s97 = scalar_select %p94, %s95, %s96
      %p100 = pneg %p94
      %p101 = scmp.eq.s32.totalorder %s21, 3
      %p102 = por %p100, %p101
      %p103 = scmp.ne.s32.totalorder %s95, %s98
      %p104 = scmp.eq.s32.totalorder %s21, 0
      %p105 = por %p103, %p104
      %p106 = scmp.ne.s32.totalorder %s95, %s98
      %p107 = scmp.eq.s32.totalorder %s26, 3
      %p108 = por %p106, %p107
      %p109 = scmp.ne.s32.totalorder %s98, %s99
      %p110 = scmp.eq.s32.totalorder %s26, 0
      %p111 = por %p109, %p110
      %p112 = scmp.ne.s32.totalorder %s98, %s99
      %p113 = scmp.eq.s32.totalorder %s27, 3
      %p114 = por %p112, %p113
      %p116 = scmp.ne.s32.totalorder %s99, %s115
      %p117 = scmp.eq.s32.totalorder %s27, 0
      %p118 = por %p116, %p117
      %s119 = ssub.s32 %s29, %s36
      %p120 = scmp.eq.s32.totalorder %s119, 0
      %s122 = sadd.s32 %s121, 1
      %s123 = scalar_select %p120, %s121, %s122
      %p126 = pneg %p120
      %p127 = scmp.eq.s32.totalorder %s21, 3
      %p128 = por %p126, %p127
      %p129 = scmp.ne.s32.totalorder %s121, %s124
      %p130 = scmp.eq.s32.totalorder %s21, 0
      %p131 = por %p129, %p130
      %p132 = scmp.ne.s32.totalorder %s121, %s124
      %p133 = scmp.eq.s32.totalorder %s26, 3
      %p134 = por %p132, %p133
      %p135 = scmp.ne.s32.totalorder %s124, %s125
      %p136 = scmp.eq.s32.totalorder %s26, 0
      %p137 = por %p135, %p136
      %p138 = scmp.ne.s32.totalorder %s124, %s125
      %p139 = scmp.eq.s32.totalorder %s27, 3
      %p140 = por %p138, %p139
      %p142 = scmp.ne.s32.totalorder %s125, %s141
      %p143 = scmp.eq.s32.totalorder %s27, 0
      %p144 = por %p142, %p143
      %s145 = ssub.s32 %s29, %s36
      %p146 = scmp.eq.s32.totalorder %s145, 0
      %s148 = sadd.s32 %s147, 1
      %s149 = scalar_select %p146, %s147, %s148
      %p152 = pneg %p146
      %p153 = scmp.eq.s32.totalorder %s21, 3
      %p154 = por %p152, %p153
      %p155 = scmp.ne.s32.totalorder %s147, %s150
      %p156 = scmp.eq.s32.totalorder %s21, 0
      %p157 = por %p155, %p156
      %p158 = scmp.ne.s32.totalorder %s147, %s150
      %p159 = scmp.eq.s32.totalorder %s26, 3
      %p160 = por %p158, %p159
      %p161 = scmp.ne.s32.totalorder %s150, %s151
      %p162 = scmp.eq.s32.totalorder %s26, 0
      %p163 = por %p161, %p162
      %p164 = scmp.ne.s32.totalorder %s150, %s151
      %p165 = scmp.eq.s32.totalorder %s27, 3
      %p166 = por %p164, %p165
      %p168 = scmp.ne.s32.totalorder %s151, %s167
      %p169 = scmp.eq.s32.totalorder %s27, 0
      %p170 = por %p168, %p169
      %s171 = ssub.s32 %s29, %s36
      %p172 = scmp.eq.s32.totalorder %s171, 0
      %s174 = sadd.s32 %s173, 1
      %s175 = scalar_select %p172, %s173, %s174
      %p178 = pneg %p172
      %p179 = scmp.eq.s32.totalorder %s21, 3
      %p180 = por %p178, %p179
      %p181 = scmp.ne.s32.totalorder %s173, %s176
      %p182 = scmp.eq.s32.totalorder %s21, 0
      %p183 = por %p181, %p182
      %p184 = scmp.ne.s32.totalorder %s173, %s176
      %p185 = scmp.eq.s32.totalorder %s26, 3
      %p186 = por %p184, %p185
      %p187 = scmp.ne.s32.totalorder %s176, %s177
      %p188 = scmp.eq.s32.totalorder %s26, 0
      %p189 = por %p187, %p188
      %p190 = scmp.ne.s32.totalorder %s176, %s177
      %p191 = scmp.eq.s32.totalorder %s27, 3
      %p192 = por %p190, %p191
      %p194 = scmp.ne.s32.totalorder %s177, %s193
      %p195 = scmp.eq.s32.totalorder %s27, 0
      %p196 = por %p194, %p195
      %s197 = ssub.s32 %s28, %s40
      %p198 = scmp.eq.s32.totalorder %s197, 0
      %s200 = sadd.s32 %s199, 1
      %s201 = scalar_select %p198, %s199, %s200
      %p204 = pneg %p198
      %p205 = scmp.eq.s32.totalorder %s21, 3
      %p206 = por %p204, %p205
      %p207 = scmp.ne.s32.totalorder %s199, %s202
      %p208 = scmp.eq.s32.totalorder %s21, 0
      %p209 = por %p207, %p208
      %p210 = scmp.ne.s32.totalorder %s199, %s202
      %p211 = scmp.eq.s32.totalorder %s26, 3
      %p212 = por %p210, %p211
      %p213 = scmp.ne.s32.totalorder %s202, %s203
      %p214 = scmp.eq.s32.totalorder %s26, 0
      %p215 = por %p213, %p214
      %p216 = scmp.ne.s32.totalorder %s202, %s203
      %p217 = scmp.eq.s32.totalorder %s27, 3
      %p218 = por %p216, %p217
      %p220 = scmp.ne.s32.totalorder %s203, %s219
      %p221 = scmp.eq.s32.totalorder %s27, 0
      %p222 = por %p220, %p221
      %p223 = scmp.le.s32.totalorder 1, %s21
      %p224 = scmp.lt.s32.totalorder %s21, 5
      %p225 = pnand %p223, %p224
      %p226 = pneg %p225
      // Predicated region
      $region9: #{gpt_forward.2} parent=5 // pred_check
        _
      $region10: #{gpt_forward.2} parent=5 // pred_check_branch
        %228 = sbr.rel (%p225) target = $region12
      $region11: #{gpt_forward.2} parent=5 // pred_region
        %s229 = ssub.s32 %s21, 1
      $region12: #{gpt_forward.2} parent=5 // pred_fallthru
        _
      %p230 = scmp.lt.s32.totalorder %s21, 4
      // Predicated region
      $region13: #{gpt_forward.2} parent=5 // pred_check
        %p231 = pneg %p230
      $region14: #{gpt_forward.2} parent=5 // pred_check_branch
        %233 = sbr.rel (%p231) target = $region16
      $region15: #{gpt_forward.2} parent=5 // pred_region
        // Predicated region
        $region17: #{gpt_forward.2} parent=15 // pred_check
          %p234 = pneg %p53
        $region18: #{gpt_forward.2} parent=15 // pred_check_branch
          %236 = sbr.rel (%p234) target = $region20
        $region19: #{gpt_forward.2} parent=15 // pred_region
          %p237 = scmp.lt.s32.totalorder %s28, 1
          %s238 = scalar_select %p237, %s28, 1
          %s239 = smul.addr %s238, 8
          %s240 = scalar_lea.vmem %s0, %s239
        $region20: #{gpt_forward.2} parent=15 // pred_fallthru
          _
        // Predicated region
        $region21: #{gpt_forward.2} parent=15 // pred_check
          %p241 = pneg %p79
        $region22: #{gpt_forward.2} parent=15 // pred_check_branch
          %243 = sbr.rel (%p241) target = $region24
        $region23: #{gpt_forward.2} parent=15 // pred_region
          %s244 = sand.u32 %s69, 1
          %s245 = scalar_lea.sflag [#allocation4], %s244
          %s246 = sand.u32 %s69, 1
          %s247 = smul.addr %s246, 192
          %s248 = scalar_lea.vmem [#allocation3], %s247
          %250 = vsyncadd %s245, 0
          %s251 = smul.addr %s29, 48
          %s252 = smul.addr %s251, 4
          %s253 = scalar_lea.hbm %s1, %s252
          %s254 = sshll.u32 %s253, 4
          %s255 = int_to_ptr.hbm [resolvable:$true] %s254
          %s256 = sshll.u32 %s248, 4
          %s257 = int_to_ptr.vmem [resolvable:$true] %s256
          %262 = dma.hbm_to_vmem [thread:$0]  %s255, 3072, %s257, %s245, 192, 192, 12
        $region24: #{gpt_forward.2} parent=15 // pred_fallthru
          _
        // Predicated region
        $region25: #{gpt_forward.2} parent=15 // pred_check
          %p263 = pneg %p105
        $region26: #{gpt_forward.2} parent=15 // pred_check_branch
          %265 = sbr.rel (%p263) target = $region28
        $region27: #{gpt_forward.2} parent=15 // pred_region
          %p266 = scmp.lt.s32.totalorder %s29, 1
          %s267 = scalar_select %p266, %s29, 1
          %s268 = smul.addr %s267, 16
          %s269 = smul.addr %s268, 4
          %s270 = scalar_lea.vmem %s2, %s269
        $region28: #{gpt_forward.2} parent=15 // pred_fallthru
          _
        // Predicated region
        $region29: #{gpt_forward.2} parent=15 // pred_check
          %p271 = pneg %p131
        $region30: #{gpt_forward.2} parent=15 // pred_check_branch
          %273 = sbr.rel (%p271) target = $region32
        $region31: #{gpt_forward.2} parent=15 // pred_region
          %s274 = sand.u32 %s21, 1
          %s275 = scalar_lea.sflag [#allocation6], %s274
          %s276 = sand.u32 %s121, 1
          %s277 = smul.addr %s276, 256
          %s278 = scalar_lea.vmem [#allocation5], %s277
          %280 = vsyncadd %s275, 0
          %s281 = smul.addr %s29, 64
          %s282 = smul.addr %s281, 4
          %s283 = scalar_lea.hbm %s3, %s282
          %s284 = sshll.u32 %s283, 4
          %s285 = int_to_ptr.hbm [resolvable:$true] %s284
          %s286 = sshll.u32 %s278, 4
          %s287 = int_to_ptr.vmem [resolvable:$true] %s286
          %292 = dma.hbm_to_vmem [thread:$0]  %s285, 4096, %s287, %s275, 256, 256, 16
        $region32: #{gpt_forward.2} parent=15 // pred_fallthru
          _
        // Predicated region
        $region33: #{gpt_forward.2} parent=15 // pred_check
          %p293 = pneg %p157
        $region34: #{gpt_forward.2} parent=15 // pred_check_branch
          %295 = sbr.rel (%p293) target = $region36
        $region35: #{gpt_forward.2} parent=15 // pred_region
          %s296 = sand.u32 %s21, 1
          %s297 = scalar_lea.sflag [#allocation6], %s296
          %s298 = sand.u32 %s147, 1
          %s299 = smul.addr %s298, 256
          %s300 = scalar_lea.vmem [#allocation7], %s299
          %302 = vsyncadd %s297, 0
          %s303 = smul.addr %s29, 64
          %s304 = smul.addr %s303, 4
          %s305 = scalar_lea.hbm %s4, %s304
          %s306 = sshll.u32 %s305, 4
          %s307 = int_to_ptr.hbm [resolvable:$true] %s306
          %s308 = sshll.u32 %s300, 4
          %s309 = int_to_ptr.vmem [resolvable:$true] %s308
          %314 = dma.hbm_to_vmem [thread:$0]  %s307, 4096, %s309, %s297, 64, 64, 4
        $region36: #{gpt_forward.2} parent=15 // pred_fallthru
          _
        // Predicated region
        $region37: #{gpt_forward.2} parent=15 // pred_check
          %p315 = pneg %p183
        $region38: #{gpt_forward.2} parent=15 // pred_check_branch
          %317 = sbr.rel (%p315) target = $region40
        $region39: #{gpt_forward.2} parent=15 // pred_region
          %s318 = sand.u32 %s173, 1
          %s319 = scalar_lea.sflag [#allocation9], %s318
          %s320 = sand.u32 %s173, 1
          %s321 = smul.addr %s320, 64
          %s322 = scalar_lea.vmem [#allocation8], %s321
          %324 = vsyncadd %s319, 0
          %s325 = smul.addr %s29, 8
          %s326 = smul.addr %s325, 8
          %s327 = scalar_lea.hbm %s5, %s326
          %s328 = sshll.u32 %s327, 4
          %s329 = int_to_ptr.hbm [resolvable:$true] %s328
          %s330 = sshll.u32 %s322, 4
          %s331 = int_to_ptr.vmem [resolvable:$true] %s330
          %336 = dma.hbm_to_vmem [thread:$0]  %s329, 1024, %s331, %s319, 512, 512, 32
        $region40: #{gpt_forward.2} parent=15 // pred_fallthru
          _
      $region16: #{gpt_forward.2} parent=5 // pred_fallthru
        _
      %p337 = scmp.le.s32.totalorder 1, %s21
      %p338 = scmp.lt.s32.totalorder %s21, 5
      %p339 = pnand %p337, %p338
      %p340 = pneg %p339
      // Predicated region
      $region41: #{gpt_forward.2} parent=5 // pred_check
        _
      $region42: #{gpt_forward.2} parent=5 // pred_check_branch
        %342 = sbr.rel (%p339) target = $region44
      $region43: #{gpt_forward.2} parent=5 // pred_region
        %s343 = ssub.s32 %s21, 1
        %s344 = sand.u32 %s72, 1
        %s345 = scalar_lea.sflag [#allocation4], %s344
        %s346 = sand.u32 %s72, 1
        %s347 = smul.addr %s346, 192
        %s348 = scalar_lea.vmem [#allocation3], %s347
        // Predicated region
        $region45: #{gpt_forward.2} parent=43 // pred_check
          %p349 = pneg %p85
        $region46: #{gpt_forward.2} parent=43 // pred_check_branch
          %351 = sbr.rel (%p349) target = $region48
        $region47: #{gpt_forward.2} parent=43 // pred_region
          %353 = dma.done %s345, 3072
        $region48: #{gpt_forward.2} parent=43 // pred_fallthru
          _
        %s354 = sand.u32 %s26, 1
        %s355 = scalar_lea.sflag [#allocation6], %s354
        %s356 = sand.u32 %s124, 1
        %s357 = smul.addr %s356, 256
        %s358 = scalar_lea.vmem [#allocation5], %s357
        // Predicated region
        $region49: #{gpt_forward.2} parent=43 // pred_check
          %p359 = pneg %p137
        $region50: #{gpt_forward.2} parent=43 // pred_check_branch
          %361 = sbr.rel (%p359) target = $region52
        $region51: #{gpt_forward.2} parent=43 // pred_region
          %363 = dma.done %s355, 4096
        $region52: #{gpt_forward.2} parent=43 // pred_fallthru
          _
        %s364 = sand.u32 %s26, 1
        %s365 = scalar_lea.sflag [#allocation6], %s364
        %s366 = sand.u32 %s150, 1
        %s367 = smul.addr %s366, 256
        %s368 = scalar_lea.vmem [#allocation7], %s367
        // Predicated region
        $region53: #{gpt_forward.2} parent=43 // pred_check
          %p369 = pneg %p163
        $region54: #{gpt_forward.2} parent=43 // pred_check_branch
          %371 = sbr.rel (%p369) target = $region56
        $region55: #{gpt_forward.2} parent=43 // pred_region
          %373 = dma.done %s365, 4096
        $region56: #{gpt_forward.2} parent=43 // pred_fallthru
          _
        %s374 = sand.u32 %s176, 1
        %s375 = scalar_lea.sflag [#allocation9], %s374
        %s376 = sand.u32 %s176, 1
        %s377 = smul.addr %s376, 64
        %s378 = scalar_lea.vmem [#allocation8], %s377
        // Predicated region
        $region57: #{gpt_forward.2} parent=43 // pred_check
          %p379 = pneg %p189
        $region58: #{gpt_forward.2} parent=43 // pred_check_branch
          %381 = sbr.rel (%p379) target = $region60
        $region59: #{gpt_forward.2} parent=43 // pred_region
          %383 = dma.done %s375, 1024
        $region60: #{gpt_forward.2} parent=43 // pred_fallthru
          _
        %p384 = scmp.lt.s32.totalorder %s30, 1
        %s385 = scalar_select %p384, %s30, 1
        %s386 = smul.addr %s385, 8
        %s387 = scalar_lea.vmem %s0, %s386
        %p388 = pneg %p59
        %p389 = pneg %p56
        %s390 = sand.u32 %s72, 1
        %s391 = scalar_lea.sflag [#allocation4], %s390
        %s392 = sand.u32 %s72, 1
        %s393 = smul.addr %s392, 192
        %s394 = scalar_lea.vmem [#allocation3], %s393
        %p395 = pneg %p85
        %p396 = pneg %p82
        %p397 = scmp.lt.s32.totalorder %s31, 1
        %s398 = scalar_select %p397, %s31, 1
        %s399 = smul.addr %s398, 16
        %s400 = smul.addr %s399, 4
        %s401 = scalar_lea.vmem %s2, %s400
        %p402 = pneg %p111
        %p403 = pneg %p108
        %s404 = sand.u32 %s26, 1
        %s405 = scalar_lea.sflag [#allocation6], %s404
        %s406 = sand.u32 %s124, 1
        %s407 = smul.addr %s406, 256
        %s408 = scalar_lea.vmem [#allocation5], %s407
        %p409 = pneg %p137
        %p410 = pneg %p134
        %s411 = sand.u32 %s26, 1
        %s412 = scalar_lea.sflag [#allocation6], %s411
        %s413 = sand.u32 %s150, 1
        %s414 = smul.addr %s413, 256
        %s415 = scalar_lea.vmem [#allocation7], %s414
        %p416 = pneg %p163
        %p417 = pneg %p160
        %s418 = sand.u32 %s176, 1
        %s419 = scalar_lea.sflag [#allocation9], %s418
        %s420 = sand.u32 %s176, 1
        %s421 = smul.addr %s420, 64
        %s422 = scalar_lea.vmem [#allocation8], %s421
        %p423 = pneg %p189
        %p424 = pneg %p186
        %p425 = pneg %p215
        %p426 = pneg %p212
        %p427 = scmp.lt.s32.totalorder %s30, 1
        %s428 = scalar_select %p427, %s30, 1
        %s429 = smul.addr %s428, 8
        %s430 = scalar_lea.vmem %s6, %s429
        %p431 = scmp.lt.s32.totalorder %s30, 1
        %s432 = scalar_select %p431, %s30, 1
        %s433 = smul.addr %s432, 8
        %s434 = scalar_lea.vmem %s0, %s433
        %p435 = scmp.lt.s32.totalorder %s31, 1
        %s436 = scalar_select %p435, %s31, 1
        %s437 = smul.addr %s436, 16
        %s438 = smul.addr %s437, 4
        %s439 = scalar_lea.vmem %s2, %s438
        %p440 = scmp.lt.s32.totalorder %s30, 1
        %s441 = scalar_select %p440, %s30, 1
        %s442 = smul.addr %s441, 8
        %s443 = scalar_lea.vmem %s6, %s442
        %p445 = scmp.eq.s32.totalorder %s31, 0
        // Predicated region
        $region61: #{gpt_forward.2} parent=43 // pred_check
          %p446 = pneg %p445
        $region62: #{gpt_forward.2} parent=43 // pred_check_branch
          %448 = sbr.rel (%p446) target = $region64
        $region63: #{gpt_forward.2} parent=43 // pred_region
          %v449 = vld [vmem:[%s434] sm:$0xff]
          %450 = vst [vmem:[%s443] sm:$0xff] %v449
        $region64: #{gpt_forward.2} parent=43 // pred_fallthru
          _
        %v451 = vld [vmem:[%s443] sm:$0xff]
        %v452 = vld [vmem:[%s378] sm:$0xff]
        %v453 = vld [vmem:[%s378 + $0x20] sm:$0xff]
        %v454 = vld [vmem:[%s378 + $0x28] sm:$0xff]
        %v455 = vld [vmem:[%s378 + $0x30] sm:$0xff]
        %v456 = vld [vmem:[%s378 + $0x38] sm:$0xff]
        %v457 = vpack.c.bf16 %v451, %v451
        %v458 = vld [vmem:[%s348] sm:$0xff]
        %v459 = vld [vmem:[%s348 + $0x8] sm:$0xf]
        %v460 = vld [vmem:[%s348 + $0xc] sm:$0xff]
        %v461 = vld [vmem:[%s348 + $0x14] sm:$0xf]
        %v462 = vld [vmem:[%s348 + $0x18] sm:$0xff]
        %v463 = vld [vmem:[%s348 + $0x20] sm:$0xf]
        %v464 = vld [vmem:[%s348 + $0x24] sm:$0xff]
        %v465 = vld [vmem:[%s348 + $0x2c] sm:$0xf]
        %v466 = vld [vmem:[%s348 + $0x30] sm:$0xff]
        %v467 = vld [vmem:[%s348 + $0x38] sm:$0xf]
        %v468 = vld [vmem:[%s348 + $0x3c] sm:$0xff]
        %v469 = vld [vmem:[%s348 + $0x44] sm:$0xf]
        %v470 = vld [vmem:[%s348 + $0x48] sm:$0xff]
        %v471 = vld [vmem:[%s348 + $0x50] sm:$0xf]
        %v472 = vld [vmem:[%s348 + $0x54] sm:$0xff]
        %v473 = vld [vmem:[%s348 + $0x5c] sm:$0xf]
        %v474 = vld [vmem:[%s348 + $0x60] sm:$0xff]
        %v475 = vld [vmem:[%s348 + $0x68] sm:$0xf]
        %v476 = vld [vmem:[%s348 + $0x6c] sm:$0xff]
        %v477 = vld [vmem:[%s348 + $0x74] sm:$0xf]
        %v478 = vld [vmem:[%s348 + $0x78] sm:$0xff]
        %v479 = vld [vmem:[%s348 + $0x80] sm:$0xf]
        %v480 = vld [vmem:[%s348 + $0x84] sm:$0xff]
        %v481 = vld [vmem:[%s348 + $0x8c] sm:$0xf]
        %v482 = vld [vmem:[%s348 + $0x90] sm:$0xff]
        %v483 = vld [vmem:[%s348 + $0x98] sm:$0xf]
        %v484 = vld [vmem:[%s348 + $0x9c] sm:$0xff]
        %v485 = vld [vmem:[%s348 + $0xa4] sm:$0xf]
        %v486 = vld [vmem:[%s348 + $0xa8] sm:$0xff]
        %v487 = vld [vmem:[%s348 + $0xb0] sm:$0xf]
        %v488 = vld [vmem:[%s348 + $0xb4] sm:$0xff]
        %v489 = vld [vmem:[%s348 + $0xbc] sm:$0xf]
        %v522 = vunpack.c.l.b16 %v458
        %v523 = vunpack.c.h.b16 %v458
        %v524 = vunpack.c.l.b16 %v459
        %v525 = vunpack.c.l.b16 %v460
        %v526 = vunpack.c.h.b16 %v460
        %v527 = vunpack.c.l.b16 %v461
        %v528 = vunpack.c.l.b16 %v462
        %v529 = vunpack.c.h.b16 %v462
        %v530 = vunpack.c.l.b16 %v463
        %v531 = vunpack.c.l.b16 %v464
        %v532 = vunpack.c.h.b16 %v464
        %v533 = vunpack.c.l.b16 %v465
        %v534 = vunpack.c.l.b16 %v466
        %v535 = vunpack.c.h.b16 %v466
        %v536 = vunpack.c.l.b16 %v467
        %v537 = vunpack.c.l.b16 %v468
        %v538 = vunpack.c.h.b16 %v468
        %v539 = vunpack.c.l.b16 %v469
        %v540 = vunpack.c.l.b16 %v470
        %v541 = vunpack.c.h.b16 %v470
        %v542 = vunpack.c.l.b16 %v471
        %v543 = vunpack.c.l.b16 %v472
        %v544 = vunpack.c.h.b16 %v472
        %v545 = vunpack.c.l.b16 %v473
        %v546 = vunpack.c.l.b16 %v474
        %v547 = vunpack.c.h.b16 %v474
        %v548 = vunpack.c.l.b16 %v475
        %v549 = vunpack.c.l.b16 %v476
        %v550 = vunpack.c.h.b16 %v476
        %v551 = vunpack.c.l.b16 %v477
        %v552 = vunpack.c.l.b16 %v478
        %v553 = vunpack.c.h.b16 %v478
        %v554 = vunpack.c.l.b16 %v479
        %v555 = vunpack.c.l.b16 %v480
        %v556 = vunpack.c.h.b16 %v480
        %v557 = vunpack.c.l.b16 %v481
        %v558 = vunpack.c.l.b16 %v482
        %v559 = vunpack.c.h.b16 %v482
        %v560 = vunpack.c.l.b16 %v483
        %v561 = vunpack.c.l.b16 %v484
        %v562 = vunpack.c.h.b16 %v484
        %v563 = vunpack.c.l.b16 %v485
        %v564 = vunpack.c.l.b16 %v486
        %v565 = vunpack.c.h.b16 %v486
        %v566 = vunpack.c.l.b16 %v487
        %v567 = vunpack.c.l.b16 %v488
        %v568 = vunpack.c.h.b16 %v488
        %v569 = vunpack.c.l.b16 %v489
        %v570 = vpack.c.b16 %v525, %v522
        %v571 = vpack.c.b16 %v526, %v523
        %v572 = vpack.c.b16 %v527, %v524
        %v573 = vpack.c.b16 %v531, %v528
        %v574 = vpack.c.b16 %v532, %v529
        %v575 = vpack.c.b16 %v533, %v530
        %v576 = vpack.c.b16 %v537, %v534
        %v577 = vpack.c.b16 %v538, %v535
        %v578 = vpack.c.b16 %v539, %v536
        %v579 = vpack.c.b16 %v543, %v540
        %v580 = vpack.c.b16 %v544, %v541
        %v581 = vpack.c.b16 %v545, %v542
        %v582 = vpack.c.b16 %v549, %v546
        %v583 = vpack.c.b16 %v550, %v547
        %v584 = vpack.c.b16 %v551, %v548
        %v585 = vpack.c.b16 %v555, %v552
        %v586 = vpack.c.b16 %v556, %v553
        %v587 = vpack.c.b16 %v557, %v554
        %v588 = vpack.c.b16 %v561, %v558
        %v589 = vpack.c.b16 %v562, %v559
        %v590 = vpack.c.b16 %v563, %v560
        %v591 = vpack.c.b16 %v567, %v564
        %v592 = vpack.c.b16 %v568, %v565
        %v593 = vpack.c.b16 %v569, %v566
        %618 = vmatpush.bf16.msra.mxu0 %v591
        %619 = vmatpush.bf16.msra.mxu0 %v588
        %620 = vmatpush.bf16.msra.mxu0 %v585
        %621 = vmatpush.bf16.msra.mxu0 %v582
        %622 = vmatpush.bf16.msra.mxu0 %v579
        %623 = vmatpush.bf16.msra.mxu0 %v576
        %624 = vmatpush.bf16.msra.mxu0 %v573
        %625 = vmatpush.bf16.msra.mxu0 %v570
        %626 = vmatmul.bf16.gmra.mxu0 %v457
        %v627 = vpop.f32.mrf.mxu0
        %v628 = vadd.f32 0.0, %v627
        %v629 = vpop.f32.mrf.mxu0
        %630 = vdwg.mxu0
        %631 = vmatpush.bf16.msra.mxu0 %v592
        %632 = vmatpush.bf16.msra.mxu0 %v589
        %633 = vmatpush.bf16.msra.mxu0 %v586
        %634 = vmatpush.bf16.msra.mxu0 %v583
        %635 = vmatpush.bf16.msra.mxu0 %v580
        %636 = vmatpush.bf16.msra.mxu0 %v577
        %637 = vmatpush.bf16.msra.mxu0 %v574
        %638 = vmatpush.bf16.msra.mxu0 %v571
        %639 = vmatmul.bf16.gmra.mxu0 %v457
        %v640 = vpop.f32.mrf.mxu0
        %v641 = vadd.f32 0.0, %v640
        %v642 = vpop.f32.mrf.mxu0
        %643 = vdwg.mxu0
        %644 = vmatpush.bf16.msra.mxu0 %v593
        %645 = vmatpush.bf16.msra.mxu0 %v590
        %646 = vmatpush.bf16.msra.mxu0 %v587
        %647 = vmatpush.bf16.msra.mxu0 %v584
        %648 = vmatpush.bf16.msra.mxu0 %v581
        %649 = vmatpush.bf16.msra.mxu0 %v578
        %650 = vmatpush.bf16.msra.mxu0 %v575
        %651 = vmatpush.bf16.msra.mxu0 %v572
        %652 = vmatmul.bf16.gmra.mxu0 %v457
        %v653 = vpop.f32.mrf.mxu0
        %v654 = vadd.f32 0.0, %v653
        %v655 = vpop.f32.mrf.mxu0
        %656 = vdwg.mxu0
        %v657 = vperm.slane %v452, 0
        %v658 = vadd.f32 %v628, %v657
        %v659 = vperm.slane %v452, 1
        %v660 = vadd.f32 %v641, %v659
        %v661 = vperm.slane %v452, 2
        %v662 = vadd.f32 %v654, %v661
        %v663 = vlaneseq
        %v664 = vshrl.u32 %v663, 7
        %v665 = vlaneseq
        %v666 = vand.u32 %v665, 127
        %vm667 = vcmp.le.s32.totalorder %v666, %v664
        %v668 = vpack.c.bf16 %v658, %v658
        %v669 = vpack.c.bf16 %v660, %v660
        %v670 = vpack.c.bf16 %v662, %v662
        %vm671 = vcmask 261120
        %v673 = vsel %vm671, %v668, 0
        %v676 = vsel %vm671, %v669, 0
        %678 = vmatpush.bf16.xpose.msra.mxu0 0
        %679 = vmatpush.bf16.xpose.msra.mxu0 0
        %680 = vmatpush.bf16.xpose.msra.mxu0 0
        %681 = vmatpush.bf16.xpose.msra.mxu0 0
        %682 = vmatpush.bf16.xpose.msra.mxu0 0
        %683 = vmatpush.bf16.xpose.msra.mxu0 0
        %684 = vmatpush.bf16.xpose.msra.mxu0 0
        %685 = vmatpush.bf16.xpose.msra.mxu0 %v676
        %686 = vmatmul.bf16.gmra.mxu0 %v673
        %v687 = vpop.f32.mrf.mxu0
        %v688 = vadd.f32 0.0, %v687
        %v689 = vpop.f32.mrf.mxu0
        %690 = vdwg.mxu0
        %v691 = vmul.f32 %v688, 0.17677669
        %v692 = vsel %vm667, %v691, -1e+30
        %vm693 = vcmask 64512
        %v694 = vsel %vm693, %v692, -inf
        %695 = vmax.xlane.f32.xlu0 %v694
        %v696 = vpop.xlane.xlu0 %695
        %v697 = vsub.f32 %v692, %v696
        %v698 = vmul.f32 %v697, 1.442695
        %v699 = vpow.pop %v698
        %v700 = vsel %vm693, %v699, 0.0
        %701 = vadd.xlane.f32.xlu0 %v700
        %v702 = vpop.xlane.xlu0 %701
        %v703 = vrcp.pop %v702
        %v704 = vmul.f32 %v699, %v703
        %v705 = vpack.c.bf16 %v704, %v704
        %v707 = vsel %vm693, %v705, 0
        %vm709 = vcmask 1043456
        %v711 = vsel %vm709, %v670, 0
        %713 = vmatpush.bf16.msra.mxu0 0
        %714 = vmatpush.bf16.msra.mxu0 0
        %715 = vmatpush.bf16.msra.mxu0 0
        %716 = vmatpush.bf16.msra.mxu0 0
        %717 = vmatpush.bf16.msra.mxu0 0
        %718 = vmatpush.bf16.msra.mxu0 0
        %719 = vmatpush.bf16.msra.mxu0 0
        %720 = vmatpush.bf16.msra.mxu0 %v711
        %721 = vmatmul.bf16.gmra.mxu0 %v707
        %v722 = vpop.f32.mrf.mxu0
        %v723 = vadd.f32 0.0, %v722
        %v724 = vpop.f32.mrf.mxu0
        %725 = vdwg.mxu0
        %726 = vst.msk [vmem:[#allocation2] sm:$0xff] %vm671, %v723
        %v728 = vunpack.c.l.b16 %v668
        %v729 = vpack.c.b16 %v728, %v728
        %730 = vrot.lane.b32.xlu0 %v729, 96
        %v731 = vpop.permute.xlu0 %730
        %v733 = vunpack.c.l.b16 %v669
        %v734 = vpack.c.b16 %v733, %v733
        %735 = vrot.lane.b32.xlu0 %v734, 96
        %v736 = vpop.permute.xlu0 %735
        %v738 = vsel %vm671, %v731, 0
        %v741 = vsel %vm671, %v736, 0
        %743 = vmatpush.bf16.xpose.msra.mxu0 0
        %744 = vmatpush.bf16.xpose.msra.mxu0 0
        %745 = vmatpush.bf16.xpose.msra.mxu0 0
        %746 = vmatpush.bf16.xpose.msra.mxu0 0
        %747 = vmatpush.bf16.xpose.msra.mxu0 0
        %748 = vmatpush.bf16.xpose.msra.mxu0 0
        %749 = vmatpush.bf16.xpose.msra.mxu0 0
        %750 = vmatpush.bf16.xpose.msra.mxu0 %v741
        %751 = vmatmul.bf16.gmra.mxu0 %v738
        %v752 = vpop.f32.mrf.mxu0
        %v753 = vadd.f32 0.0, %v752
        %v754 = vpop.f32.mrf.mxu0
        %755 = vdwg.mxu0
        %v756 = vmul.f32 %v753, 0.17677669
        %v757 = vsel %vm667, %v756, -1e+30
        %v758 = vsel %vm693, %v757, -inf
        %759 = vmax.xlane.f32.xlu0 %v758
        %v760 = vpop.xlane.xlu0 %759
        %v761 = vsub.f32 %v757, %v760
        %v762 = vmul.f32 %v761, 1.442695
        %v763 = vpow.pop %v762
        %v764 = vsel %vm693, %v763, 0.0
        %765 = vadd.xlane.f32.xlu0 %v764
        %v766 = vpop.xlane.xlu0 %765
        %v767 = vrcp.pop %v766
        %v768 = vmul.f32 %v763, %v767
        %v769 = vpack.c.bf16 %v768, %v768
        %v771 = vunpack.c.l.b16 %v670
        %v772 = vpack.c.b16 %v771, %v771
        %773 = vrot.lane.b32.xlu0 %v772, 96
        %v774 = vpop.permute.xlu0 %773
        %v776 = vsel %vm693, %v769, 0
        %v779 = vsel %vm709, %v774, 0
        %781 = vmatpush.bf16.msra.mxu0 0
        %782 = vmatpush.bf16.msra.mxu0 0
        %783 = vmatpush.bf16.msra.mxu0 0
        %784 = vmatpush.bf16.msra.mxu0 0
        %785 = vmatpush.bf16.msra.mxu0 0
        %786 = vmatpush.bf16.msra.mxu0 0
        %787 = vmatpush.bf16.msra.mxu0 0
        %788 = vmatpush.bf16.msra.mxu0 %v779
        %789 = vmatmul.bf16.gmra.mxu0 %v776
        %v790 = vpop.f32.mrf.mxu0
        %v791 = vadd.f32 0.0, %v790
        %v792 = vpop.f32.mrf.mxu0
        %793 = vdwg.mxu0
        %795 = vrot.lane.b32.xlu0 %v791, 32
        %v796 = vpop.permute.xlu0 %795
        %vm798 = vcmask 523520
        %799 = vst.msk [vmem:[#allocation2] sm:$0xff] %vm798, %v796
        %800 = vrot.lane.b32.xlu0 %v729, 64
        %v801 = vpop.permute.xlu0 %800
        %802 = vrot.lane.b32.xlu0 %v734, 64
        %v803 = vpop.permute.xlu0 %802
        %v805 = vsel %vm671, %v801, 0
        %v808 = vsel %vm671, %v803, 0
        %810 = vmatpush.bf16.xpose.msra.mxu0 0
        %811 = vmatpush.bf16.xpose.msra.mxu0 0
        %812 = vmatpush.bf16.xpose.msra.mxu0 0
        %813 = vmatpush.bf16.xpose.msra.mxu0 0
        %814 = vmatpush.bf16.xpose.msra.mxu0 0
        %815 = vmatpush.bf16.xpose.msra.mxu0 0
        %816 = vmatpush.bf16.xpose.msra.mxu0 0
        %817 = vmatpush.bf16.xpose.msra.mxu0 %v808
        %818 = vmatmul.bf16.gmra.mxu0 %v805
        %v819 = vpop.f32.mrf.mxu0
        %v820 = vadd.f32 0.0, %v819
        %v821 = vpop.f32.mrf.mxu0
        %822 = vdwg.mxu0
        %v823 = vmul.f32 %v820, 0.17677669
        %v824 = vsel %vm667, %v823, -1e+30
        %v825 = vsel %vm693, %v824, -inf
        %826 = vmax.xlane.f32.xlu0 %v825
        %v827 = vpop.xlane.xlu0 %826
        %v828 = vsub.f32 %v824, %v827
        %v829 = vmul.f32 %v828, 1.442695
        %v830 = vpow.pop %v829
        %v831 = vsel %vm693, %v830, 0.0
        %832 = vadd.xlane.f32.xlu0 %v831
        %v833 = vpop.xlane.xlu0 %832
        %v834 = vrcp.pop %v833
        %v835 = vmul.f32 %v830, %v834
        %v836 = vpack.c.bf16 %v835, %v835
        %837 = vrot.lane.b32.xlu0 %v772, 64
        %v838 = vpop.permute.xlu0 %837
        %v840 = vsel %vm693, %v836, 0
        %v843 = vsel %vm709, %v838, 0
        %845 = vmatpush.bf16.msra.mxu0 0
        %846 = vmatpush.bf16.msra.mxu0 0
        %847 = vmatpush.bf16.msra.mxu0 0
        %848 = vmatpush.bf16.msra.mxu0 0
        %849 = vmatpush.bf16.msra.mxu0 0
        %850 = vmatpush.bf16.msra.mxu0 0
        %851 = vmatpush.bf16.msra.mxu0 0
        %852 = vmatpush.bf16.msra.mxu0 %v843
        %853 = vmatmul.bf16.gmra.mxu0 %v840
        %v854 = vpop.f32.mrf.mxu0
        %v855 = vadd.f32 0.0, %v854
        %v856 = vpop.f32.mrf.mxu0
        %857 = vdwg.mxu0
        %859 = vrot.lane.b32.xlu0 %v855, 64
        %v860 = vpop.permute.xlu0 %859
        %vm862 = vcmask 785920
        %863 = vst.msk [vmem:[#allocation2] sm:$0xff] %vm862, %v860
        %864 = vrot.lane.b32.xlu0 %v729, 32
        %v865 = vpop.permute.xlu0 %864
        %866 = vrot.lane.b32.xlu0 %v734, 32
        %v867 = vpop.permute.xlu0 %866
        %v869 = vsel %vm671, %v865, 0
        %v872 = vsel %vm671, %v867, 0
        %874 = vmatpush.bf16.xpose.msra.mxu0 0
        %875 = vmatpush.bf16.xpose.msra.mxu0 0
        %876 = vmatpush.bf16.xpose.msra.mxu0 0
        %877 = vmatpush.bf16.xpose.msra.mxu0 0
        %878 = vmatpush.bf16.xpose.msra.mxu0 0
        %879 = vmatpush.bf16.xpose.msra.mxu0 0
        %880 = vmatpush.bf16.xpose.msra.mxu0 0
        %881 = vmatpush.bf16.xpose.msra.mxu0 %v872
        %882 = vmatmul.bf16.gmra.mxu0 %v869
        %v883 = vpop.f32.mrf.mxu0
        %v884 = vadd.f32 0.0, %v883
        %v885 = vpop.f32.mrf.mxu0
        %886 = vdwg.mxu0
        %v887 = vmul.f32 %v884, 0.17677669
        %v888 = vsel %vm667, %v887, -1e+30
        %v889 = vsel %vm693, %v888, -inf
        %890 = vmax.xlane.f32.xlu0 %v889
        %v891 = vpop.xlane.xlu0 %890
        %v892 = vsub.f32 %v888, %v891
        %v893 = vmul.f32 %v892, 1.442695
        %v894 = vpow.pop %v893
        %v895 = vsel %vm693, %v894, 0.0
        %896 = vadd.xlane.f32.xlu0 %v895
        %v897 = vpop.xlane.xlu0 %896
        %v898 = vrcp.pop %v897
        %v899 = vmul.f32 %v894, %v898
        %v900 = vpack.c.bf16 %v899, %v899
        %901 = vrot.lane.b32.xlu0 %v772, 32
        %v902 = vpop.permute.xlu0 %901
        %v904 = vsel %vm693, %v900, 0
        %v907 = vsel %vm709, %v902, 0
        %909 = vmatpush.bf16.msra.mxu0 0
        %910 = vmatpush.bf16.msra.mxu0 0
        %911 = vmatpush.bf16.msra.mxu0 0
        %912 = vmatpush.bf16.msra.mxu0 0
        %913 = vmatpush.bf16.msra.mxu0 0
        %914 = vmatpush.bf16.msra.mxu0 0
        %915 = vmatpush.bf16.msra.mxu0 0
        %916 = vmatpush.bf16.msra.mxu0 %v907
        %917 = vmatmul.bf16.gmra.mxu0 %v904
        %v918 = vpop.f32.mrf.mxu0
        %v919 = vadd.f32 0.0, %v918
        %v920 = vpop.f32.mrf.mxu0
        %921 = vdwg.mxu0
        %923 = vrot.lane.b32.xlu0 %v919, 96
        %v924 = vpop.permute.xlu0 %923
        %vm926 = vcmask 1048320
        %927 = vst.msk [vmem:[#allocation2] sm:$0xff] %vm926, %v924
        %v928 = vld [vmem:[#allocation2] sm:$0xff]
        %v929 = vpack.c.bf16 %v928, %v928
        %v930 = vld [vmem:[%s439] sm:$0xf]
        %v931 = vld [vmem:[%s439 + $0x4] sm:$0xf]
        %v932 = vld [vmem:[%s439 + $0x8] sm:$0xf]
        %v933 = vld [vmem:[%s439 + $0xc] sm:$0xf]
        %v934 = vld [vmem:[%s439 + $0x10] sm:$0xf]
        %v935 = vld [vmem:[%s439 + $0x14] sm:$0xf]
        %v936 = vld [vmem:[%s439 + $0x18] sm:$0xf]
        %v937 = vld [vmem:[%s439 + $0x1c] sm:$0xf]
        %v938 = vld [vmem:[%s439 + $0x20] sm:$0xf]
        %v939 = vld [vmem:[%s439 + $0x24] sm:$0xf]
        %v940 = vld [vmem:[%s439 + $0x28] sm:$0xf]
        %v941 = vld [vmem:[%s439 + $0x2c] sm:$0xf]
        %v942 = vld [vmem:[%s439 + $0x30] sm:$0xf]
        %v943 = vld [vmem:[%s439 + $0x34] sm:$0xf]
        %v944 = vld [vmem:[%s439 + $0x38] sm:$0xf]
        %v945 = vld [vmem:[%s439 + $0x3c] sm:$0xf]
        %v946 = vperm.slane %v452, 3
        %v963 = vunpack.c.l.b16 %v930
        %v964 = vunpack.c.l.b16 %v931
        %v965 = vunpack.c.l.b16 %v932
        %v966 = vunpack.c.l.b16 %v933
        %v967 = vunpack.c.l.b16 %v934
        %v968 = vunpack.c.l.b16 %v935
        %v969 = vunpack.c.l.b16 %v936
        %v970 = vunpack.c.l.b16 %v937
        %v971 = vunpack.c.l.b16 %v938
        %v972 = vunpack.c.l.b16 %v939
        %v973 = vunpack.c.l.b16 %v940
        %v974 = vunpack.c.l.b16 %v941
        %v975 = vunpack.c.l.b16 %v942
        %v976 = vunpack.c.l.b16 %v943
        %v977 = vunpack.c.l.b16 %v944
        %v978 = vunpack.c.l.b16 %v945
        %v979 = vpack.c.b16 %v964, %v963
        %v980 = vpack.c.b16 %v966, %v965
        %v981 = vpack.c.b16 %v968, %v967
        %v982 = vpack.c.b16 %v970, %v969
        %v983 = vpack.c.b16 %v972, %v971
        %v984 = vpack.c.b16 %v974, %v973
        %v985 = vpack.c.b16 %v976, %v975
        %v986 = vpack.c.b16 %v978, %v977
        %995 = vmatpush.bf16.msra.mxu0 %v986
        %996 = vmatpush.bf16.msra.mxu0 %v985
        %997 = vmatpush.bf16.msra.mxu0 %v984
        %998 = vmatpush.bf16.msra.mxu0 %v983
        %999 = vmatpush.bf16.msra.mxu0 %v982
        %1000 = vmatpush.bf16.msra.mxu0 %v981
        %1001 = vmatpush.bf16.msra.mxu0 %v980
        %1002 = vmatpush.bf16.msra.mxu0 %v979
        %1003 = vmatmul.bf16.gmra.mxu0 %v929
        %v1004 = vpop.f32.mrf.mxu0
        %v1005 = vadd.f32 %v946, %v1004
        %v1006 = vpop.f32.mrf.mxu0
        %1007 = vdwg.mxu0
        %v1008 = vadd.f32 %v451, %v1005
        %1009 = vadd.xlane.f32.xlu0 %v1008
        %v1010 = vpop.xlane.xlu0 %1009
        %v1011 = vrcp.pop 128.0
        %v1012 = vmul.f32 128.0, %v1011
        %v1013 = vsub.f32 1.0, %v1012
        %v1014 = vmul.f32 %v1011, %v1013
        %v1015 = vadd.f32 %v1011, %v1014
        %vm1016 = vweird.f32 %v1011
        %v1017 = vsel %vm1016, %v1011, %v1015
        %v1018 = vmul.f32 %v1010, %v1017
        %v1019 = vsub.f32 %v1008, %v1018
        %v1020 = vmul.f32 %v1019, %v1019
        %1021 = vadd.xlane.f32.xlu0 %v1020
        %v1022 = vpop.xlane.xlu0 %1021
        %v1023 = vmul.f32 %v1022, %v1017
        %v1024 = vadd.f32 %v1023, 1e-05
        %v1025 = vrsqrt.pop %v1024
        %v1026 = vmul.f32 %v1025, %v1024
        %v1027 = vmul.f32 %v1026, %v1025
        %v1028 = vmul.f32 0.5, %v1027
        %v1029 = vsub.f32 1.5, %v1028
        %v1030 = vmul.f32 %v1025, %v1029
        %vm1031 = vweird.f32 %v1024
        %vm1032 = vweird.f32 %v1025
        %vm1033 = vmor %vm1031, %vm1032
        %v1034 = vsel %vm1033, %v1025, %v1030
        %v1035 = vmul.f32 %v1019, %v1034
        %v1036 = vperm.slane %v452, 5
        %v1037 = vmul.f32 %v1035, %v1036
        %v1038 = vperm.slane %v452, 6
        %v1039 = vadd.f32 %v1037, %v1038
        %v1040 = vpack.c.bf16 %v1039, %v1039
        %v1041 = vld [vmem:[%s358] sm:$0xff]
        %v1042 = vld [vmem:[%s358 + $0x8] sm:$0xff]
        %v1043 = vld [vmem:[%s358 + $0x10] sm:$0xff]
        %v1044 = vld [vmem:[%s358 + $0x18] sm:$0xff]
        %v1045 = vld [vmem:[%s358 + $0x20] sm:$0xff]
        %v1046 = vld [vmem:[%s358 + $0x28] sm:$0xff]
        %v1047 = vld [vmem:[%s358 + $0x30] sm:$0xff]
        %v1048 = vld [vmem:[%s358 + $0x38] sm:$0xff]
        %v1049 = vld [vmem:[%s358 + $0x40] sm:$0xff]
        %v1050 = vld [vmem:[%s358 + $0x48] sm:$0xff]
        %v1051 = vld [vmem:[%s358 + $0x50] sm:$0xff]
        %v1052 = vld [vmem:[%s358 + $0x58] sm:$0xff]
        %v1053 = vld [vmem:[%s358 + $0x60] sm:$0xff]
        %v1054 = vld [vmem:[%s358 + $0x68] sm:$0xff]
        %v1055 = vld [vmem:[%s358 + $0x70] sm:$0xff]
        %v1056 = vld [vmem:[%s358 + $0x78] sm:$0xff]
        %v1057 = vld [vmem:[%s358 + $0x80] sm:$0xff]
        %v1058 = vld [vmem:[%s358 + $0x88] sm:$0xff]
        %v1059 = vld [vmem:[%s358 + $0x90] sm:$0xff]
        %v1060 = vld [vmem:[%s358 + $0x98] sm:$0xff]
        %v1061 = vld [vmem:[%s358 + $0xa0] sm:$0xff]
        %v1062 = vld [vmem:[%s358 + $0xa8] sm:$0xff]
        %v1063 = vld [vmem:[%s358 + $0xb0] sm:$0xff]
        %v1064 = vld [vmem:[%s358 + $0xb8] sm:$0xff]
        %v1065 = vld [vmem:[%s358 + $0xc0] sm:$0xff]
        %v1066 = vld [vmem:[%s358 + $0xc8] sm:$0xff]
        %v1067 = vld [vmem:[%s358 + $0xd0] sm:$0xff]
        %v1068 = vld [vmem:[%s358 + $0xd8] sm:$0xff]
        %v1069 = vld [vmem:[%s358 + $0xe0] sm:$0xff]
        %v1070 = vld [vmem:[%s358 + $0xe8] sm:$0xff]
        %v1071 = vld [vmem:[%s358 + $0xf0] sm:$0xff]
        %v1072 = vld [vmem:[%s358 + $0xf8] sm:$0xff]
        %v1073 = vperm.slane %v453, 1
        %v1074 = vperm.slane %v454, 1
        %v1075 = vperm.slane %v455, 1
        %v1076 = vperm.slane %v456, 1
        %v1109 = vunpack.c.l.b16 %v1041
        %v1110 = vunpack.c.h.b16 %v1041
        %v1111 = vunpack.c.l.b16 %v1042
        %v1112 = vunpack.c.h.b16 %v1042
        %v1113 = vunpack.c.l.b16 %v1043
        %v1114 = vunpack.c.h.b16 %v1043
        %v1115 = vunpack.c.l.b16 %v1044
        %v1116 = vunpack.c.h.b16 %v1044
        %v1117 = vunpack.c.l.b16 %v1045
        %v1118 = vunpack.c.h.b16 %v1045
        %v1119 = vunpack.c.l.b16 %v1046
        %v1120 = vunpack.c.h.b16 %v1046
        %v1121 = vunpack.c.l.b16 %v1047
        %v1122 = vunpack.c.h.b16 %v1047
        %v1123 = vunpack.c.l.b16 %v1048
        %v1124 = vunpack.c.h.b16 %v1048
        %v1125 = vunpack.c.l.b16 %v1049
        %v1126 = vunpack.c.h.b16 %v1049
        %v1127 = vunpack.c.l.b16 %v1050
        %v1128 = vunpack.c.h.b16 %v1050
        %v1129 = vunpack.c.l.b16 %v1051
        %v1130 = vunpack.c.h.b16 %v1051
        %v1131 = vunpack.c.l.b16 %v1052
        %v1132 = vunpack.c.h.b16 %v1052
        %v1133 = vunpack.c.l.b16 %v1053
        %v1134 = vunpack.c.h.b16 %v1053
        %v1135 = vunpack.c.l.b16 %v1054
        %v1136 = vunpack.c.h.b16 %v1054
        %v1137 = vunpack.c.l.b16 %v1055
        %v1138 = vunpack.c.h.b16 %v1055
        %v1139 = vunpack.c.l.b16 %v1056
        %v1140 = vunpack.c.h.b16 %v1056
        %v1141 = vunpack.c.l.b16 %v1057
        %v1142 = vunpack.c.h.b16 %v1057
        %v1143 = vunpack.c.l.b16 %v1058
        %v1144 = vunpack.c.h.b16 %v1058
        %v1145 = vunpack.c.l.b16 %v1059
        %v1146 = vunpack.c.h.b16 %v1059
        %v1147 = vunpack.c.l.b16 %v1060
        %v1148 = vunpack.c.h.b16 %v1060
        %v1149 = vunpack.c.l.b16 %v1061
        %v1150 = vunpack.c.h.b16 %v1061
        %v1151 = vunpack.c.l.b16 %v1062
        %v1152 = vunpack.c.h.b16 %v1062
        %v1153 = vunpack.c.l.b16 %v1063
        %v1154 = vunpack.c.h.b16 %v1063
        %v1155 = vunpack.c.l.b16 %v1064
        %v1156 = vunpack.c.h.b16 %v1064
        %v1157 = vunpack.c.l.b16 %v1065
        %v1158 = vunpack.c.h.b16 %v1065
        %v1159 = vunpack.c.l.b16 %v1066
        %v1160 = vunpack.c.h.b16 %v1066
        %v1161 = vunpack.c.l.b16 %v1067
        %v1162 = vunpack.c.h.b16 %v1067
        %v1163 = vunpack.c.l.b16 %v1068
        %v1164 = vunpack.c.h.b16 %v1068
        %v1165 = vunpack.c.l.b16 %v1069
        %v1166 = vunpack.c.h.b16 %v1069
        %v1167 = vunpack.c.l.b16 %v1070
        %v1168 = vunpack.c.h.b16 %v1070
        %v1169 = vunpack.c.l.b16 %v1071
        %v1170 = vunpack.c.h.b16 %v1071
        %v1171 = vunpack.c.l.b16 %v1072
        %v1172 = vunpack.c.h.b16 %v1072
        %v1173 = vpack.c.b16 %v1113, %v1109
        %v1174 = vpack.c.b16 %v1114, %v1110
        %v1175 = vpack.c.b16 %v1115, %v1111
        %v1176 = vpack.c.b16 %v1116, %v1112
        %v1177 = vpack.c.b16 %v1121, %v1117
        %v1178 = vpack.c.b16 %v1122, %v1118
        %v1179 = vpack.c.b16 %v1123, %v1119
        %v1180 = vpack.c.b16 %v1124, %v1120
        %v1181 = vpack.c.b16 %v1129, %v1125
        %v1182 = vpack.c.b16 %v1130, %v1126
        %v1183 = vpack.c.b16 %v1131, %v1127
        %v1184 = vpack.c.b16 %v1132, %v1128
        %v1185 = vpack.c.b16 %v1137, %v1133
        %v1186 = vpack.c.b16 %v1138, %v1134
        %v1187 = vpack.c.b16 %v1139, %v1135
        %v1188 = vpack.c.b16 %v1140, %v1136
        %v1189 = vpack.c.b16 %v1145, %v1141
        %v1190 = vpack.c.b16 %v1146, %v1142
        %v1191 = vpack.c.b16 %v1147, %v1143
        %v1192 = vpack.c.b16 %v1148, %v1144
        %v1193 = vpack.c.b16 %v1153, %v1149
        %v1194 = vpack.c.b16 %v1154, %v1150
        %v1195 = vpack.c.b16 %v1155, %v1151
        %v1196 = vpack.c.b16 %v1156, %v1152
        %v1197 = vpack.c.b16 %v1161, %v1157
        %v1198 = vpack.c.b16 %v1162, %v1158
        %v1199 = vpack.c.b16 %v1163, %v1159
        %v1200 = vpack.c.b16 %v1164, %v1160
        %v1201 = vpack.c.b16 %v1169, %v1165
        %v1202 = vpack.c.b16 %v1170, %v1166
        %v1203 = vpack.c.b16 %v1171, %v1167
        %v1204 = vpack.c.b16 %v1172, %v1168
        %1237 = vmatpush.bf16.msra.mxu0 %v1201
        %1238 = vmatpush.bf16.msra.mxu0 %v1197
        %1239 = vmatpush.bf16.msra.mxu0 %v1193
        %1240 = vmatpush.bf16.msra.mxu0 %v1189
        %1241 = vmatpush.bf16.msra.mxu0 %v1185
        %1242 = vmatpush.bf16.msra.mxu0 %v1181
        %1243 = vmatpush.bf16.msra.mxu0 %v1177
        %1244 = vmatpush.bf16.msra.mxu0 %v1173
        %1245 = vmatmul.bf16.gmra.mxu0 %v1040
        %v1246 = vpop.f32.mrf.mxu0
        %v1247 = vadd.f32 %v1073, %v1246
        %v1248 = vpop.f32.mrf.mxu0
        %1249 = vdwg.mxu0
        %1250 = vmatpush.bf16.msra.mxu0 %v1202
        %1251 = vmatpush.bf16.msra.mxu0 %v1198
        %1252 = vmatpush.bf16.msra.mxu0 %v1194
        %1253 = vmatpush.bf16.msra.mxu0 %v1190
        %1254 = vmatpush.bf16.msra.mxu0 %v1186
        %1255 = vmatpush.bf16.msra.mxu0 %v1182
        %1256 = vmatpush.bf16.msra.mxu0 %v1178
        %1257 = vmatpush.bf16.msra.mxu0 %v1174
        %1258 = vmatmul.bf16.gmra.mxu0 %v1040
        %v1259 = vpop.f32.mrf.mxu0
        %v1260 = vadd.f32 %v1074, %v1259
        %v1261 = vpop.f32.mrf.mxu0
        %1262 = vdwg.mxu0
        %1263 = vmatpush.bf16.msra.mxu0 %v1203
        %1264 = vmatpush.bf16.msra.mxu0 %v1199
        %1265 = vmatpush.bf16.msra.mxu0 %v1195
        %1266 = vmatpush.bf16.msra.mxu0 %v1191
        %1267 = vmatpush.bf16.msra.mxu0 %v1187
        %1268 = vmatpush.bf16.msra.mxu0 %v1183
        %1269 = vmatpush.bf16.msra.mxu0 %v1179
        %1270 = vmatpush.bf16.msra.mxu0 %v1175
        %1271 = vmatmul.bf16.gmra.mxu0 %v1040
        %v1272 = vpop.f32.mrf.mxu0
        %v1273 = vadd.f32 %v1075, %v1272
        %v1274 = vpop.f32.mrf.mxu0
        %1275 = vdwg.mxu0
        %1276 = vmatpush.bf16.msra.mxu0 %v1204
        %1277 = vmatpush.bf16.msra.mxu0 %v1200
        %1278 = vmatpush.bf16.msra.mxu0 %v1196
        %1279 = vmatpush.bf16.msra.mxu0 %v1192
        %1280 = vmatpush.bf16.msra.mxu0 %v1188
        %1281 = vmatpush.bf16.msra.mxu0 %v1184
        %1282 = vmatpush.bf16.msra.mxu0 %v1180
        %1283 = vmatpush.bf16.msra.mxu0 %v1176
        %1284 = vmatmul.bf16.gmra.mxu0 %v1040
        %v1285 = vpop.f32.mrf.mxu0
        %v1286 = vadd.f32 %v1076, %v1285
        %v1287 = vpop.f32.mrf.mxu0
        %1288 = vdwg.mxu0
        %v1289 = vmul.f32 %v1247, 0.5
        %v1290 = vmul.f32 %v1260, 0.5
        %v1291 = vmul.f32 %v1273, 0.5
        %v1292 = vmul.f32 %v1286, 0.5
        %v1293 = vmul.f32 %v1247, 0.044715
        %v1294 = vmul.f32 %v1260, 0.044715
        %v1295 = vmul.f32 %v1273, 0.044715
        %v1296 = vmul.f32 %v1286, 0.044715
        %v1297 = vmul.f32 %v1293, %v1247
        %v1298 = vmul.f32 %v1294, %v1260
        %v1299 = vmul.f32 %v1295, %v1273
        %v1300 = vmul.f32 %v1296, %v1286
        %v1301 = vmul.f32 %v1297, %v1247
        %v1302 = vmul.f32 %v1298, %v1260
        %v1303 = vmul.f32 %v1299, %v1273
        %v1304 = vmul.f32 %v1300, %v1286
        %v1305 = vadd.f32 %v1247, %v1301
        %v1306 = vadd.f32 %v1260, %v1302
        %v1307 = vadd.f32 %v1273, %v1303
        %v1308 = vadd.f32 %v1286, %v1304
        %v1309 = vmul.f32 %v1305, 0.7978846
        %v1310 = vmul.f32 %v1306, 0.7978846
        %v1311 = vmul.f32 %v1307, 0.7978846
        %v1312 = vmul.f32 %v1308, 0.7978846
        %v1313 = vtanh.pop %v1309
        %v1314 = vtanh.pop %v1310
        %v1315 = vtanh.pop %v1311
        %v1316 = vtanh.pop %v1312
        %v1317 = vadd.f32 %v1313, 1.0
        %v1318 = vadd.f32 %v1314, 1.0
        %v1319 = vadd.f32 %v1315, 1.0
        %v1320 = vadd.f32 %v1316, 1.0
        %v1321 = vmul.f32 %v1289, %v1317
        %v1322 = vmul.f32 %v1290, %v1318
        %v1323 = vmul.f32 %v1291, %v1319
        %v1324 = vmul.f32 %v1292, %v1320
        %v1325 = vpack.c.bf16 %v1321, %v1321
        %v1326 = vpack.c.bf16 %v1322, %v1322
        %v1327 = vpack.c.bf16 %v1323, %v1323
        %v1328 = vpack.c.bf16 %v1324, %v1324
        %v1329 = vld [vmem:[%s368] sm:$0xf]
        %v1330 = vld [vmem:[%s368 + $0x4] sm:$0xf]
        %v1331 = vld [vmem:[%s368 + $0x8] sm:$0xf]
        %v1332 = vld [vmem:[%s368 + $0xc] sm:$0xf]
        %v1333 = vld [vmem:[%s368 + $0x10] sm:$0xf]
        %v1334 = vld [vmem:[%s368 + $0x14] sm:$0xf]
        %v1335 = vld [vmem:[%s368 + $0x18] sm:$0xf]
        %v1336 = vld [vmem:[%s368 + $0x1c] sm:$0xf]
        %v1337 = vld [vmem:[%s368 + $0x20] sm:$0xf]
        %v1338 = vld [vmem:[%s368 + $0x24] sm:$0xf]
        %v1339 = vld [vmem:[%s368 + $0x28] sm:$0xf]
        %v1340 = vld [vmem:[%s368 + $0x2c] sm:$0xf]
        %v1341 = vld [vmem:[%s368 + $0x30] sm:$0xf]
        %v1342 = vld [vmem:[%s368 + $0x34] sm:$0xf]
        %v1343 = vld [vmem:[%s368 + $0x38] sm:$0xf]
        %v1344 = vld [vmem:[%s368 + $0x3c] sm:$0xf]
        %v1345 = vld [vmem:[%s368 + $0x40] sm:$0xf]
        %v1346 = vld [vmem:[%s368 + $0x44] sm:$0xf]
        %v1347 = vld [vmem:[%s368 + $0x48] sm:$0xf]
        %v1348 = vld [vmem:[%s368 + $0x4c] sm:$0xf]
        %v1349 = vld [vmem:[%s368 + $0x50] sm:$0xf]
        %v1350 = vld [vmem:[%s368 + $0x54] sm:$0xf]
        %v1351 = vld [vmem:[%s368 + $0x58] sm:$0xf]
        %v1352 = vld [vmem:[%s368 + $0x5c] sm:$0xf]
        %v1353 = vld [vmem:[%s368 + $0x60] sm:$0xf]
        %v1354 = vld [vmem:[%s368 + $0x64] sm:$0xf]
        %v1355 = vld [vmem:[%s368 + $0x68] sm:$0xf]
        %v1356 = vld [vmem:[%s368 + $0x6c] sm:$0xf]
        %v1357 = vld [vmem:[%s368 + $0x70] sm:$0xf]
        %v1358 = vld [vmem:[%s368 + $0x74] sm:$0xf]
        %v1359 = vld [vmem:[%s368 + $0x78] sm:$0xf]
        %v1360 = vld [vmem:[%s368 + $0x7c] sm:$0xf]
        %v1361 = vld [vmem:[%s368 + $0x80] sm:$0xf]
        %v1362 = vld [vmem:[%s368 + $0x84] sm:$0xf]
        %v1363 = vld [vmem:[%s368 + $0x88] sm:$0xf]
        %v1364 = vld [vmem:[%s368 + $0x8c] sm:$0xf]
        %v1365 = vld [vmem:[%s368 + $0x90] sm:$0xf]
        %v1366 = vld [vmem:[%s368 + $0x94] sm:$0xf]
        %v1367 = vld [vmem:[%s368 + $0x98] sm:$0xf]
        %v1368 = vld [vmem:[%s368 + $0x9c] sm:$0xf]
        %v1369 = vld [vmem:[%s368 + $0xa0] sm:$0xf]
        %v1370 = vld [vmem:[%s368 + $0xa4] sm:$0xf]
        %v1371 = vld [vmem:[%s368 + $0xa8] sm:$0xf]
        %v1372 = vld [vmem:[%s368 + $0xac] sm:$0xf]
        %v1373 = vld [vmem:[%s368 + $0xb0] sm:$0xf]
        %v1374 = vld [vmem:[%s368 + $0xb4] sm:$0xf]
        %v1375 = vld [vmem:[%s368 + $0xb8] sm:$0xf]
        %v1376 = vld [vmem:[%s368 + $0xbc] sm:$0xf]
        %v1377 = vld [vmem:[%s368 + $0xc0] sm:$0xf]
        %v1378 = vld [vmem:[%s368 + $0xc4] sm:$0xf]
        %v1379 = vld [vmem:[%s368 + $0xc8] sm:$0xf]
        %v1380 = vld [vmem:[%s368 + $0xcc] sm:$0xf]
        %v1381 = vld [vmem:[%s368 + $0xd0] sm:$0xf]
        %v1382 = vld [vmem:[%s368 + $0xd4] sm:$0xf]
        %v1383 = vld [vmem:[%s368 + $0xd8] sm:$0xf]
        %v1384 = vld [vmem:[%s368 + $0xdc] sm:$0xf]
        %v1385 = vld [vmem:[%s368 + $0xe0] sm:$0xf]
        %v1386 = vld [vmem:[%s368 + $0xe4] sm:$0xf]
        %v1387 = vld [vmem:[%s368 + $0xe8] sm:$0xf]
        %v1388 = vld [vmem:[%s368 + $0xec] sm:$0xf]
        %v1389 = vld [vmem:[%s368 + $0xf0] sm:$0xf]
        %v1390 = vld [vmem:[%s368 + $0xf4] sm:$0xf]
        %v1391 = vld [vmem:[%s368 + $0xf8] sm:$0xf]
        %v1392 = vld [vmem:[%s368 + $0xfc] sm:$0xf]
        %v1393 = vperm.slane %v452, 4
        %v1458 = vunpack.c.l.b16 %v1329
        %v1459 = vunpack.c.l.b16 %v1330
        %v1460 = vunpack.c.l.b16 %v1331
        %v1461 = vunpack.c.l.b16 %v1332
        %v1462 = vunpack.c.l.b16 %v1333
        %v1463 = vunpack.c.l.b16 %v1334
        %v1464 = vunpack.c.l.b16 %v1335
        %v1465 = vunpack.c.l.b16 %v1336
        %v1466 = vunpack.c.l.b16 %v1337
        %v1467 = vunpack.c.l.b16 %v1338
        %v1468 = vunpack.c.l.b16 %v1339
        %v1469 = vunpack.c.l.b16 %v1340
        %v1470 = vunpack.c.l.b16 %v1341
        %v1471 = vunpack.c.l.b16 %v1342
        %v1472 = vunpack.c.l.b16 %v1343
        %v1473 = vunpack.c.l.b16 %v1344
        %v1474 = vunpack.c.l.b16 %v1345
        %v1475 = vunpack.c.l.b16 %v1346
        %v1476 = vunpack.c.l.b16 %v1347
        %v1477 = vunpack.c.l.b16 %v1348
        %v1478 = vunpack.c.l.b16 %v1349
        %v1479 = vunpack.c.l.b16 %v1350
        %v1480 = vunpack.c.l.b16 %v1351
        %v1481 = vunpack.c.l.b16 %v1352
        %v1482 = vunpack.c.l.b16 %v1353
        %v1483 = vunpack.c.l.b16 %v1354
        %v1484 = vunpack.c.l.b16 %v1355
        %v1485 = vunpack.c.l.b16 %v1356
        %v1486 = vunpack.c.l.b16 %v1357
        %v1487 = vunpack.c.l.b16 %v1358
        %v1488 = vunpack.c.l.b16 %v1359
        %v1489 = vunpack.c.l.b16 %v1360
        %v1490 = vunpack.c.l.b16 %v1361
        %v1491 = vunpack.c.l.b16 %v1362
        %v1492 = vunpack.c.l.b16 %v1363
        %v1493 = vunpack.c.l.b16 %v1364
        %v1494 = vunpack.c.l.b16 %v1365
        %v1495 = vunpack.c.l.b16 %v1366
        %v1496 = vunpack.c.l.b16 %v1367
        %v1497 = vunpack.c.l.b16 %v1368
        %v1498 = vunpack.c.l.b16 %v1369
        %v1499 = vunpack.c.l.b16 %v1370
        %v1500 = vunpack.c.l.b16 %v1371
        %v1501 = vunpack.c.l.b16 %v1372
        %v1502 = vunpack.c.l.b16 %v1373
        %v1503 = vunpack.c.l.b16 %v1374
        %v1504 = vunpack.c.l.b16 %v1375
        %v1505 = vunpack.c.l.b16 %v1376
        %v1506 = vunpack.c.l.b16 %v1377
        %v1507 = vunpack.c.l.b16 %v1378
        %v1508 = vunpack.c.l.b16 %v1379
        %v1509 = vunpack.c.l.b16 %v1380
        %v1510 = vunpack.c.l.b16 %v1381
        %v1511 = vunpack.c.l.b16 %v1382
        %v1512 = vunpack.c.l.b16 %v1383
        %v1513 = vunpack.c.l.b16 %v1384
        %v1514 = vunpack.c.l.b16 %v1385
        %v1515 = vunpack.c.l.b16 %v1386
        %v1516 = vunpack.c.l.b16 %v1387
        %v1517 = vunpack.c.l.b16 %v1388
        %v1518 = vunpack.c.l.b16 %v1389
        %v1519 = vunpack.c.l.b16 %v1390
        %v1520 = vunpack.c.l.b16 %v1391
        %v1521 = vunpack.c.l.b16 %v1392
        %v1522 = vpack.c.b16 %v1459, %v1458
        %v1523 = vpack.c.b16 %v1461, %v1460
        %v1524 = vpack.c.b16 %v1463, %v1462
        %v1525 = vpack.c.b16 %v1465, %v1464
        %v1526 = vpack.c.b16 %v1467, %v1466
        %v1527 = vpack.c.b16 %v1469, %v1468
        %v1528 = vpack.c.b16 %v1471, %v1470
        %v1529 = vpack.c.b16 %v1473, %v1472
        %v1530 = vpack.c.b16 %v1475, %v1474
        %v1531 = vpack.c.b16 %v1477, %v1476
        %v1532 = vpack.c.b16 %v1479, %v1478
        %v1533 = vpack.c.b16 %v1481, %v1480
        %v1534 = vpack.c.b16 %v1483, %v1482
        %v1535 = vpack.c.b16 %v1485, %v1484
        %v1536 = vpack.c.b16 %v1487, %v1486
        %v1537 = vpack.c.b16 %v1489, %v1488
        %v1538 = vpack.c.b16 %v1491, %v1490
        %v1539 = vpack.c.b16 %v1493, %v1492
        %v1540 = vpack.c.b16 %v1495, %v1494
        %v1541 = vpack.c.b16 %v1497, %v1496
        %v1542 = vpack.c.b16 %v1499, %v1498
        %v1543 = vpack.c.b16 %v1501, %v1500
        %v1544 = vpack.c.b16 %v1503, %v1502
        %v1545 = vpack.c.b16 %v1505, %v1504
        %v1546 = vpack.c.b16 %v1507, %v1506
        %v1547 = vpack.c.b16 %v1509, %v1508
        %v1548 = vpack.c.b16 %v1511, %v1510
        %v1549 = vpack.c.b16 %v1513, %v1512
        %v1550 = vpack.c.b16 %v1515, %v1514
        %v1551 = vpack.c.b16 %v1517, %v1516
        %v1552 = vpack.c.b16 %v1519, %v1518
        %v1553 = vpack.c.b16 %v1521, %v1520
        %1586 = vmatpush.bf16.msra.mxu0 %v1529
        %1587 = vmatpush.bf16.msra.mxu0 %v1528
        %1588 = vmatpush.bf16.msra.mxu0 %v1527
        %1589 = vmatpush.bf16.msra.mxu0 %v1526
        %1590 = vmatpush.bf16.msra.mxu0 %v1525
        %1591 = vmatpush.bf16.msra.mxu0 %v1524
        %1592 = vmatpush.bf16.msra.mxu0 %v1523
        %1593 = vmatpush.bf16.msra.mxu0 %v1522
        %1594 = vmatmul.bf16.gmra.mxu0 %v1325
        %v1595 = vpop.f32.mrf.mxu0
        %v1596 = vadd.f32 %v1393, %v1595
        %v1597 = vpop.f32.mrf.mxu0
        %1598 = vdwg.mxu0
        %1599 = vmatpush.bf16.msra.mxu0 %v1537
        %1600 = vmatpush.bf16.msra.mxu0 %v1536
        %1601 = vmatpush.bf16.msra.mxu0 %v1535
        %1602 = vmatpush.bf16.msra.mxu0 %v1534
        %1603 = vmatpush.bf16.msra.mxu0 %v1533
        %1604 = vmatpush.bf16.msra.mxu0 %v1532
        %1605 = vmatpush.bf16.msra.mxu0 %v1531
        %1606 = vmatpush.bf16.msra.mxu0 %v1530
        %1607 = vmatmul.bf16.gmra.mxu0 %v1326
        %v1608 = vpop.f32.mrf.mxu0
        %v1609 = vadd.f32 %v1596, %v1608
        %v1610 = vpop.f32.mrf.mxu0
        %1611 = vdwg.mxu0
        %1612 = vmatpush.bf16.msra.mxu0 %v1545
        %1613 = vmatpush.bf16.msra.mxu0 %v1544
        %1614 = vmatpush.bf16.msra.mxu0 %v1543
        %1615 = vmatpush.bf16.msra.mxu0 %v1542
        %1616 = vmatpush.bf16.msra.mxu0 %v1541
        %1617 = vmatpush.bf16.msra.mxu0 %v1540
        %1618 = vmatpush.bf16.msra.mxu0 %v1539
        %1619 = vmatpush.bf16.msra.mxu0 %v1538
        %1620 = vmatmul.bf16.gmra.mxu0 %v1327
        %v1621 = vpop.f32.mrf.mxu0
        %v1622 = vadd.f32 %v1609, %v1621
        %v1623 = vpop.f32.mrf.mxu0
        %1624 = vdwg.mxu0
        %1625 = vmatpush.bf16.msra.mxu0 %v1553
        %1626 = vmatpush.bf16.msra.mxu0 %v1552
        %1627 = vmatpush.bf16.msra.mxu0 %v1551
        %1628 = vmatpush.bf16.msra.mxu0 %v1550
        %1629 = vmatpush.bf16.msra.mxu0 %v1549
        %1630 = vmatpush.bf16.msra.mxu0 %v1548
        %1631 = vmatpush.bf16.msra.mxu0 %v1547
        %1632 = vmatpush.bf16.msra.mxu0 %v1546
        %1633 = vmatmul.bf16.gmra.mxu0 %v1328
        %v1634 = vpop.f32.mrf.mxu0
        %v1635 = vadd.f32 %v1622, %v1634
        %v1636 = vpop.f32.mrf.mxu0
        %1637 = vdwg.mxu0
        %v1638 = vadd.f32 %v1039, %v1635
        %1639 = vadd.xlane.f32.xlu0 %v1638
        %v1640 = vpop.xlane.xlu0 %1639
        %v1641 = vmul.f32 %v1640, %v1017
        %v1642 = vsub.f32 %v1638, %v1641
        %v1643 = vmul.f32 %v1642, %v1642
        %1644 = vadd.xlane.f32.xlu0 %v1643
        %v1645 = vpop.xlane.xlu0 %1644
        %v1646 = vmul.f32 %v1645, %v1017
        %v1647 = vadd.f32 %v1646, 1e-05
        %v1648 = vrsqrt.pop %v1647
        %v1649 = vmul.f32 %v1648, %v1647
        %v1650 = vmul.f32 %v1649, %v1648
        %v1651 = vmul.f32 0.5, %v1650
        %v1652 = vsub.f32 1.5, %v1651
        %v1653 = vmul.f32 %v1648, %v1652
        %vm1654 = vweird.f32 %v1647
        %vm1655 = vweird.f32 %v1648
        %vm1656 = vmor %vm1654, %vm1655
        %v1657 = vsel %vm1656, %v1648, %v1653
        %v1658 = vmul.f32 %v1642, %v1657
        %v1659 = vperm.slane %v452, 7
        %v1660 = vmul.f32 %v1658, %v1659
        %v1661 = vperm.slane %v453, 0
        %v1662 = vadd.f32 %v1660, %v1661
        %1663 = vst [vmem:[%s443] sm:$0xff] %v1662
        %p1664 = scmp.lt.s32.totalorder %s30, 1
        %s1665 = scalar_select %p1664, %s30, 1
        %s1666 = smul.addr %s1665, 8
        %s1667 = scalar_lea.vmem %s6, %s1666
        // Predicated region
        $region65: #{gpt_forward.2} parent=43 // pred_check
          %p1668 = pneg %p212
        $region66: #{gpt_forward.2} parent=43 // pred_check_branch
          %1670 = sbr.rel (%p1668) target = $region68
        $region67: #{gpt_forward.2} parent=43 // pred_region
          _
        $region68: #{gpt_forward.2} parent=43 // pred_fallthru
          _
      $region44: #{gpt_forward.2} parent=5 // pred_fallthru
        _
      %p1671 = scmp.le.s32.totalorder 2, %s21
      // Predicated region
      $region69: #{gpt_forward.2} parent=5 // pred_check
        %p1672 = pneg %p1671
      $region70: #{gpt_forward.2} parent=5 // pred_check_branch
        %1674 = sbr.rel (%p1672) target = $region72
      $region71: #{gpt_forward.2} parent=5 // pred_region
        %s1675 = ssub.s32 %s21, 2
        // Predicated region
        $region73: #{gpt_forward.2} parent=71 // pred_check
          %p1676 = pneg %p218
        $region74: #{gpt_forward.2} parent=71 // pred_check_branch
          %1678 = sbr.rel (%p1676) target = $region76
        $region75: #{gpt_forward.2} parent=71 // pred_region
          %p1679 = scmp.lt.s32.totalorder %s32, 1
          %s1680 = scalar_select %p1679, %s32, 1
          %s1681 = smul.addr %s1680, 8
          %s1682 = scalar_lea.vmem %s6, %s1681
        $region76: #{gpt_forward.2} parent=71 // pred_fallthru
          _
      $region72: #{gpt_forward.2} parent=5 // pred_fallthru
        _
    $region6: #{gpt_forward.2} parent=1 // loop_footer
      %s25 = sadd.s32 1, %s21
    $region7: #{gpt_forward.2} parent=1 // loop_footer_branch
      %20 = sbr.rel target = $region3
    $region8: #{gpt_forward.2} parent=1 // loop_exit
      _
    %1683 = vsyncpa [#allocation4], 1
    %s1684 = scalar_lea.sflag [#allocation4], 1
    %1685 = vsyncpa %s1684, 1
    %1686 = vsyncpa [#allocation6], 1
    %s1687 = scalar_lea.sflag [#allocation6], 1
    %1688 = vsyncpa %s1687, 1
    %1689 = vsyncpa [#allocation9], 1
    %s1690 = scalar_lea.sflag [#allocation9], 1
    %1691 = vsyncpa %s1690, 1

</llo_original>
